<compile_context>
chip_gen: v7x
topology: tpu7x:2x2x1
jax: 0.10.0
libtpu: 0.0.40
codegen_flags: <defaults>
</compile_context>

<pallas_src>
import functools

import jax
import jax.numpy as jnp
import numpy as np
from jax.experimental import pallas as pl
from jax.experimental.pallas import tpu as pltpu


# ----------------------------------------------------------------------------
# Fused Pallas kernel: conv1(3x3) + bias + temb + SiLU + conv2(3x3) + bias
# ----------------------------------------------------------------------------
def _fused_denoiser_kernel(xcol_ref, w1_ref, add1_ref, w2_ref, b2_ref, mask_ref,
                           o_ref, *, H, W):
    """One batch element per grid step.

    xcol_ref : (9*Cin, H*W)    im2col of the zero-padded input (built on host)
    w1_ref   : (hidden, 9*Cin) conv1 weights, (Cout, K) layout
    add1_ref : (hidden, 1)     bias1 + per-sample time embedding
    w2_ref   : (Cout, 9*hidden) conv2 weights
    b2_ref   : (Cout, 1)       bias2
    mask_ref : (9, H*W)        1.0 where a shifted tap is in-bounds, 0.0 in the halo
    o_ref    : (Cout, H*W)     lane-dense output block (= flattened NCHW)
    """
    HW = H * W

    # ---- conv1: one MXU matmul, channels on sublanes / spatial on lanes ----
    acc1 = jnp.dot(w1_ref[...], xcol_ref[...],
                   preferred_element_type=jnp.float32)        # (hidden, HW)
    acc1 = acc1 + add1_ref[...]                                # bias1 + temb (broadcast)
    h = acc1 * jax.nn.sigmoid(acc1)                            # SiLU; stays in VMEM

    # ---- build im2col of h in-register: 8 lane shifts + halo masks ----
    # shifted_k[c, j] = h[c, j + oy*W + ox] if (y+oy, x+ox) is in bounds else 0,
    # where j = y*W + x.  Wrap-around values are always masked, so a slice of the
    # doubled array gives the shift without any padding / HBM traffic.
    h2 = jnp.concatenate([h, h], axis=1)                       # (hidden, 2*HW), lane-aligned
    cols = []
    for k in range(9):                                         # k = dy*3 + dx
        oy, ox = k // 3 - 1, k % 3 - 1
        s = oy * W + ox                                        # flat spatial shift
        if s == 0:
            cols.append(h)                                     # center tap, mask is all-ones
        else:
            a = s % HW
            shifted = h2[:, a:a + HW]                          # shifted[j] = h[(j+s) % HW]
            cols.append(shifted * mask_ref[pl.ds(k, 1), :])    # zero the halo
    hcol = jnp.concatenate(cols, axis=0)                       # (9*hidden, HW); K=288

    # ---- conv2: one MXU matmul + bias, lane-dense store ----
    acc2 = jnp.dot(w2_ref[...], hcol, preferred_element_type=jnp.float32)  # (Cout, HW)
    o_ref[...] = (acc2 + b2_ref[...]).astype(o_ref.dtype)


def fused_denoiser_pallas(x_col, w1_mat, add1, w2_mat, b2_col, masks, *, H, W):
    """x_col: (B, 9*Cin, H*W); returns (B, Cout, H*W) float32 (flattened NCHW)."""
    B, K1, HW = x_col.shape
    hidden = w1_mat.shape[0]
    out_ch, K2 = w2_mat.shape

    kernel = functools.partial(_fused_denoiser_kernel, H=H, W=W)
    return pl.pallas_call(
        kernel,
        out_shape=jax.ShapeDtypeStruct((B, out_ch, HW), jnp.float32),
        grid=(B,),
        in_specs=[
            pl.BlockSpec((pl.Squeezed(), K1, HW), lambda b: (b, 0, 0)),     # per-sample im2col
            pl.BlockSpec((hidden, K1), lambda b: (0, 0)),                   # w1 (resident)
            pl.BlockSpec((pl.Squeezed(), hidden, 1), lambda b: (b, 0, 0)),  # bias1 + temb[b]
            pl.BlockSpec((out_ch, K2), lambda b: (0, 0)),                   # w2 (resident)
            pl.BlockSpec((out_ch, 1), lambda b: (0, 0)),                    # bias2
            pl.BlockSpec((9, HW), lambda b: (0, 0)),                        # halo masks
        ],
        out_specs=pl.BlockSpec((pl.Squeezed(), out_ch, HW), lambda b: (b, 0, 0)),
        compiler_params=pltpu.CompilerParams(
            dimension_semantics=("parallel",)),    # B=2 -> both TensorCores on v7x
    )(x_col, w1_mat, add1, w2_mat, b2_col, masks)


# ----------------------------------------------------------------------------
# ImprovedDDPM wrapper (JAX/Pallas)
# ----------------------------------------------------------------------------
class ImprovedDDPMPallas:
    def __init__(self, img_size=16, image_channels=4, hidden=32,
                 n_subsequence_steps=100, n_diffusion_steps=1000,
                 vlb_weight=0.001, seed=42):
        self.img_size = img_size
        self.image_channels = image_channels
        self.hidden = hidden
        self.n_subsequence_steps = n_subsequence_steps
        self.n_diffusion_steps = n_diffusion_steps
        self.vlb_weight = vlb_weight

        # --- cosine beta schedule (matches get_cos_beta_schedule) ---
        s = 0.008
        steps = n_diffusion_steps
        diffusion_step = jnp.linspace(0.0, steps - 1, steps)
        alphas = jnp.cos((diffusion_step / steps + s) / (1 + s) * jnp.pi / 2) ** 2
        alphas = alphas / alphas[0]
        self.alpha_bar = alphas
        self.prev_alpha_bar = jnp.concatenate([jnp.ones(1), self.alpha_bar[:-1]])
        self.beta = jnp.clip(1.0 - self.alpha_bar / self.prev_alpha_bar, 0.0, 0.999)
        # NOTE: the original PyTorch divides by (1 - alpha_bar) which is 0 at t=0
        # (nan); the denominator is clamped here so beta_tilde[0] is finite (== 0).
        self.beta_tilde = ((1.0 - self.prev_alpha_bar)
                           / jnp.maximum(1.0 - self.alpha_bar, 1e-12) * self.beta)
        self.subsequence_step = jnp.linspace(
            0, n_diffusion_steps - 1, n_subsequence_steps).astype(jnp.int32)

        # --- deterministic parameters of the wrapped denoiser model ---
        k = jax.random.PRNGKey(seed)
        k_t, k_bt, k_w1, k_b1, k_w2, k_b2 = jax.random.split(k, 6)
        C, Hd = image_channels, hidden
        self.params = dict(
            wt=jax.random.normal(k_t, (1, Hd), jnp.float32) * 0.1,
            bt=jax.random.normal(k_bt, (Hd,), jnp.float32) * 0.1,
            w1=jax.random.normal(k_w1, (3, 3, C, Hd), jnp.float32) * 0.1,  # HWIO
            b1=jax.random.normal(k_b1, (Hd,), jnp.float32) * 0.1,
            w2=jax.random.normal(k_w2, (3, 3, Hd, C), jnp.float32) * 0.1,  # HWIO
            b2=jax.random.normal(k_b2, (C,), jnp.float32) * 0.1,
        )

        # --- kernel-layout weights: (Cout, 9*Cin), row/col order = (dy, dx, cin) ---
        self.w1_mat = self.params['w1'].reshape(9 * C, Hd).T     # (hidden, 9*C)
        self.w2_mat = self.params['w2'].reshape(9 * Hd, C).T     # (C, 9*hidden)
        self.b2_col = self.params['b2'].reshape(C, 1)

        # --- halo validity masks for conv2's in-kernel lane shifts: (9, H*W) ---
        yy, xx = np.meshgrid(np.arange(img_size), np.arange(img_size), indexing='ij')
        m = np.zeros((9, img_size * img_size), np.float32)
        for k9 in range(9):
            oy, ox = k9 // 3 - 1, k9 % 3 - 1
            valid = ((yy + oy >= 0) & (yy + oy < img_size) &
                     (xx + ox >= 0) & (xx + ox < img_size))
            m[k9] = valid.reshape(-1).astype(np.float32)
        self.halo_masks = jnp.asarray(m)

        self._jit_forward = jax.jit(self._forward_impl)

    # ------------------------------------------------------------------
    def _forward_impl(self, noisy_image, diffusion_step):
        p = self.params
        B, C, H, W = noisy_image.shape
        HW = H * W

        # Time-embedding MLP (tiny -> plain JAX glue), normalized timestep.
        t = diffusion_step.reshape(B, 1).astype(jnp.float32) / self.n_diffusion_steps
        temb = jax.nn.silu(t @ p['wt'] + p['bt'][None, :])               # (B, hidden)
        add1 = (p['b1'][None, :] + temb).reshape(B, self.hidden, 1)      # bias1 + temb

        # Host-side im2col of the padded input (channel-first, NCHW-native ordering).
        x = noisy_image.astype(jnp.float32)
        x_pad = jnp.pad(x, ((0, 0), (0, 0), (1, 1), (1, 1)))             # (B, C, H+2, W+2)
        taps = [x_pad[:, :, dy:dy + H, dx:dx + W].reshape(B, C, HW)
                for dy in range(3) for dx in range(3)]
        x_col = jnp.concatenate(taps, axis=1)                            # (B, 9*C, HW)

        out_flat = fused_denoiser_pallas(x_col, self.w1_mat, add1,
                                         self.w2_mat, self.b2_col,
                                         self.halo_masks, H=H, W=W)      # (B, C, HW)
        return out_flat.reshape(B, C, H, W)                              # already NCHW

    def forward(self, noisy_image, diffusion_step):
        """noisy_image: (B, C, H, W) float32 NCHW; diffusion_step: (B,) int32."""
        if diffusion_step.ndim == 1:            # mirrors the PyTorch .view(-1,1,1,1)
            diffusion_step = diffusion_step.reshape(-1, 1, 1, 1)
        return self._jit_forward(noisy_image, diffusion_step)

    __call__ = forward

    # Pure-JAX reference of the same wrapped model (for verification).
    def forward_ref(self, noisy_image, diffusion_step):
        p = self.params
        if diffusion_step.ndim == 1:
            diffusion_step = diffusion_step.reshape(-1, 1, 1, 1)
        B = noisy_image.shape[0]
        t = diffusion_step.reshape(B, 1).astype(jnp.float32) / self.n_diffusion_steps
        temb = jax.nn.silu(t @ p['wt'] + p['bt'][None, :])
        x = jnp.transpose(noisy_image, (0, 2, 3, 1)).astype(jnp.float32)

        def conv(v, w, b):
            return jax.lax.conv_general_dilated(
                v, w, (1, 1), 'SAME',
                dimension_numbers=('NHWC', 'HWIO', 'NHWC')) + b[None, None, None, :]

        h = jax.nn.silu(conv(x, p['w1'], p['b1']) + temb[:, None, None, :])
        o = conv(h, p['w2'], p['b2'])
        return jnp.transpose(o, (0, 3, 1, 2))


# ----------------------------------------------------------------------------
if __name__ == "__main__":
    B, C, H, W = 2, 4, 16, 16
    ddpm = ImprovedDDPMPallas(img_size=H, image_channels=C, hidden=32)

    key = jax.random.PRNGKey(0)
    k_img, k_step = jax.random.split(key)
    noisy_image = jax.random.normal(k_img, (B, C, H, W), jnp.float32)
    diffusion_step = jax.random.randint(k_step, (B,), 0, ddpm.n_diffusion_steps,
                                        dtype=jnp.int32)

    out = ddpm(noisy_image, diffusion_step)
    out = jax.block_until_ready(out)

    ref = ddpm.forward_ref(noisy_image, diffusion_step)
    np.testing.assert_allclose(np.asarray(out), np.asarray(ref),
                               rtol=1e-4, atol=1e-4)
    assert out.shape == (B, C, H, W)

    # TODO(synk): sample()/get_model_var() are host-side inference-loop logic
    # (iterative denoising over 100 subsequence steps + RNG) and are not part of
    # forward(); not kernelized.
    print("KERNEL_OK")
</pallas_src>

<mosaic_0001>
module attributes {stable_mosaic.version = 11 : i64} {
  func.func @_fused_denoiser_kernel(%arg0: i32, %arg1: memref<1x36x256xf32, #tpu.memory_space<vmem>>, %arg2: memref<32x36xf32, #tpu.memory_space<vmem>>, %arg3: memref<1x32x1xf32, #tpu.memory_space<vmem>>, %arg4: memref<4x288xf32, #tpu.memory_space<vmem>>, %arg5: memref<4x1xf32, #tpu.memory_space<vmem>>, %arg6: memref<9x256xf32, #tpu.memory_space<vmem>>, %arg7: memref<1x4x256xf32, #tpu.memory_space<vmem>>) attributes {dimension_semantics = [#tpu.dimension_semantics<parallel>], iteration_bounds = array<i64: 2>, scalar_prefetch = 0 : i64, scratch_operands = 0 : i64, tpu.core_type = #tpu.core_type<tc>, window_params = [{transform_indices = @transform_0, window_bounds = array<i64: 1, 36, 256>}, {pipeline_mode = #tpu.pipeline_mode<synchronous>, transform_indices = @transform_1, window_bounds = array<i64: 32, 36>}, {transform_indices = @transform_2, window_bounds = array<i64: 1, 32, 1>}, {pipeline_mode = #tpu.pipeline_mode<synchronous>, transform_indices = @transform_3, window_bounds = array<i64: 4, 288>}, {pipeline_mode = #tpu.pipeline_mode<synchronous>, transform_indices = @transform_4, window_bounds = array<i64: 4, 1>}, {pipeline_mode = #tpu.pipeline_mode<synchronous>, transform_indices = @transform_5, window_bounds = array<i64: 9, 256>}, {transform_indices = @transform_6, window_bounds = array<i64: 1, 4, 256>}]} {
    %c0 = arith.constant 0 : index
    %c0_0 = arith.constant 0 : index
    %0 = vector.load %arg2[%c0, %c0_0] : memref<32x36xf32, #tpu.memory_space<vmem>>, vector<32x36xf32>
    %c0_1 = arith.constant 0 : index
    %c0_2 = arith.constant 0 : index
    %c0_3 = arith.constant 0 : index
    %1 = vector.load %arg1[%c0_1, %c0_2, %c0_3] : memref<1x36x256xf32, #tpu.memory_space<vmem>>, vector<1x36x256xf32>
    %2 = vector.shape_cast %1 : vector<1x36x256xf32> to vector<36x256xf32>
    %cst = arith.constant dense<0.000000e+00> : vector<32x256xf32>
    %3 = tpu.matmul %0, %2, %cst {dimension_numbers = #tpu.dot_dimension_numbers<[1], [0], [0], [1], [0, 0, 1, 1], [], []>} : vector<32x36xf32>, vector<36x256xf32>, vector<32x256xf32> -> vector<32x256xf32>
    %c0_4 = arith.constant 0 : index
    %c0_5 = arith.constant 0 : index
    %c0_6 = arith.constant 0 : index
    %4 = vector.load %arg3[%c0_4, %c0_5, %c0_6] : memref<1x32x1xf32, #tpu.memory_space<vmem>>, vector<1x32x1xf32>
    %5 = vector.shape_cast %4 : vector<1x32x1xf32> to vector<32x1xf32>
    %6 = vector.broadcast %5 : vector<32x1xf32> to vector<32x256xf32>
    %7 = arith.addf %3, %6 : vector<32x256xf32>
    %8 = arith.negf %7 : vector<32x256xf32>
    %9 = math.exp %8 : vector<32x256xf32>
    %cst_7 = arith.constant 1.000000e+00 : f32
    %10 = vector.broadcast %cst_7 : f32 to vector<32x256xf32>
    %11 = arith.addf %10, %9 : vector<32x256xf32>
    %12 = arith.divf %10, %11 : vector<32x256xf32>
    %13 = arith.mulf %7, %12 : vector<32x256xf32>
    %14 = tpu.concatenate %13, %13 in 1 : vector<32x256xf32>, vector<32x256xf32> -> vector<32x512xf32>
    %15 = vector.extract_strided_slice %14 {offsets = [0, 239], sizes = [32, 256], strides = [1, 1]} : vector<32x512xf32> to vector<32x256xf32>
    %c0_8 = arith.constant 0 : index
    %c0_9 = arith.constant 0 : index
    %16 = vector.load %arg6[%c0_8, %c0_9] : memref<9x256xf32, #tpu.memory_space<vmem>>, vector<1x256xf32>
    %17 = vector.broadcast %16 : vector<1x256xf32> to vector<32x256xf32>
    %18 = arith.mulf %15, %17 : vector<32x256xf32>
    %19 = vector.extract_strided_slice %14 {offsets = [0, 240], sizes = [32, 256], strides = [1, 1]} : vector<32x512xf32> to vector<32x256xf32>
    %c1 = arith.constant 1 : index
    %c0_10 = arith.constant 0 : index
    %20 = vector.load %arg6[%c1, %c0_10] : memref<9x256xf32, #tpu.memory_space<vmem>>, vector<1x256xf32>
    %21 = vector.broadcast %20 : vector<1x256xf32> to vector<32x256xf32>
    %22 = arith.mulf %19, %21 : vector<32x256xf32>
    %23 = vector.extract_strided_slice %14 {offsets = [0, 241], sizes = [32, 256], strides = [1, 1]} : vector<32x512xf32> to vector<32x256xf32>
    %c2 = arith.constant 2 : index
    %c0_11 = arith.constant 0 : index
    %24 = vector.load %arg6[%c2, %c0_11] : memref<9x256xf32, #tpu.memory_space<vmem>>, vector<1x256xf32>
    %25 = vector.broadcast %24 : vector<1x256xf32> to vector<32x256xf32>
    %26 = arith.mulf %23, %25 : vector<32x256xf32>
    %27 = vector.extract_strided_slice %14 {offsets = [0, 255], sizes = [32, 256], strides = [1, 1]} : vector<32x512xf32> to vector<32x256xf32>
    %c3 = arith.constant 3 : index
    %c0_12 = arith.constant 0 : index
    %28 = vector.load %arg6[%c3, %c0_12] : memref<9x256xf32, #tpu.memory_space<vmem>>, vector<1x256xf32>
    %29 = vector.broadcast %28 : vector<1x256xf32> to vector<32x256xf32>
    %30 = arith.mulf %27, %29 : vector<32x256xf32>
    %31 = vector.extract_strided_slice %14 {offsets = [0, 1], sizes = [32, 256], strides = [1, 1]} : vector<32x512xf32> to vector<32x256xf32>
    %c5 = arith.constant 5 : index
    %c0_13 = arith.constant 0 : index
    %32 = vector.load %arg6[%c5, %c0_13] : memref<9x256xf32, #tpu.memory_space<vmem>>, vector<1x256xf32>
    %33 = vector.broadcast %32 : vector<1x256xf32> to vector<32x256xf32>
    %34 = arith.mulf %31, %33 : vector<32x256xf32>
    %35 = vector.extract_strided_slice %14 {offsets = [0, 15], sizes = [32, 256], strides = [1, 1]} : vector<32x512xf32> to vector<32x256xf32>
    %c6 = arith.constant 6 : index
    %c0_14 = arith.constant 0 : index
    %36 = vector.load %arg6[%c6, %c0_14] : memref<9x256xf32, #tpu.memory_space<vmem>>, vector<1x256xf32>
    %37 = vector.broadcast %36 : vector<1x256xf32> to vector<32x256xf32>
    %38 = arith.mulf %35, %37 : vector<32x256xf32>
    %39 = vector.extract_strided_slice %14 {offsets = [0, 16], sizes = [32, 256], strides = [1, 1]} : vector<32x512xf32> to vector<32x256xf32>
    %c7 = arith.constant 7 : index
    %c0_15 = arith.constant 0 : index
    %40 = vector.load %arg6[%c7, %c0_15] : memref<9x256xf32, #tpu.memory_space<vmem>>, vector<1x256xf32>
    %41 = vector.broadcast %40 : vector<1x256xf32> to vector<32x256xf32>
    %42 = arith.mulf %39, %41 : vector<32x256xf32>
    %43 = vector.extract_strided_slice %14 {offsets = [0, 17], sizes = [32, 256], strides = [1, 1]} : vector<32x512xf32> to vector<32x256xf32>
    %c8 = arith.constant 8 : index
    %c0_16 = arith.constant 0 : index
    %44 = vector.load %arg6[%c8, %c0_16] : memref<9x256xf32, #tpu.memory_space<vmem>>, vector<1x256xf32>
    %45 = vector.broadcast %44 : vector<1x256xf32> to vector<32x256xf32>
    %46 = arith.mulf %43, %45 : vector<32x256xf32>
    %47 = tpu.concatenate %18, %22, %26, %30, %13, %34, %38, %42, %46 in 0 : vector<32x256xf32>, vector<32x256xf32>, vector<32x256xf32>, vector<32x256xf32>, vector<32x256xf32>, vector<32x256xf32>, vector<32x256xf32>, vector<32x256xf32>, vector<32x256xf32> -> vector<288x256xf32>
    %c0_17 = arith.constant 0 : index
    %c0_18 = arith.constant 0 : index
    %48 = vector.load %arg4[%c0_17, %c0_18] : memref<4x288xf32, #tpu.memory_space<vmem>>, vector<4x288xf32>
    %cst_19 = arith.constant dense<0.000000e+00> : vector<4x256xf32>
    %49 = tpu.matmul %48, %47, %cst_19 {dimension_numbers = #tpu.dot_dimension_numbers<[1], [0], [0], [1], [0, 0, 1, 1], [], []>} : vector<4x288xf32>, vector<288x256xf32>, vector<4x256xf32> -> vector<4x256xf32>
    %c0_20 = arith.constant 0 : index
    %c0_21 = arith.constant 0 : index
    %50 = vector.load %arg5[%c0_20, %c0_21] : memref<4x1xf32, #tpu.memory_space<vmem>>, vector<4x1xf32>
    %51 = vector.broadcast %50 : vector<4x1xf32> to vector<4x256xf32>
    %52 = arith.addf %49, %51 : vector<4x256xf32>
    %c0_22 = arith.constant 0 : index
    %c0_23 = arith.constant 0 : index
    %c0_24 = arith.constant 0 : index
    %53 = vector.load %arg7[%c0_22, %c0_23, %c0_24] : memref<1x4x256xf32, #tpu.memory_space<vmem>>, vector<1x4x256xf32>
    %54 = vector.shape_cast %53 : vector<1x4x256xf32> to vector<4x256xf32>
    %55 = vector.shape_cast %52 : vector<4x256xf32> to vector<1x4x256xf32>
    tpu.vector_store %arg7[%c0_22, %c0_23, %c0_24], %55 {strides = array<i32>} : memref<1x4x256xf32, #tpu.memory_space<vmem>>, vector<1x4x256xf32>,
    return
  }
  func.func @transform_0(%arg0: i32) -> (i32, i32, i32) {
    %c0_i32 = arith.constant 0 : i32
    %c0_i32_0 = arith.constant 0 : i32
    %c0_i32_1 = arith.constant 0 : i32
    return %arg0, %c0_i32, %c0_i32_0 : i32, i32, i32
  }
  func.func @transform_1(%arg0: i32) -> (i32, i32) {
    %c0_i32 = arith.constant 0 : i32
    %c0_i32_0 = arith.constant 0 : i32
    %c0_i32_1 = arith.constant 0 : i32
    return %c0_i32, %c0_i32_0 : i32, i32
  }
  func.func @transform_2(%arg0: i32) -> (i32, i32, i32) {
    %c0_i32 = arith.constant 0 : i32
    %c0_i32_0 = arith.constant 0 : i32
    %c0_i32_1 = arith.constant 0 : i32
    return %arg0, %c0_i32, %c0_i32_0 : i32, i32, i32
  }
  func.func @transform_3(%arg0: i32) -> (i32, i32) {
    %c0_i32 = arith.constant 0 : i32
    %c0_i32_0 = arith.constant 0 : i32
    %c0_i32_1 = arith.constant 0 : i32
    return %c0_i32, %c0_i32_0 : i32, i32
  }
  func.func @transform_4(%arg0: i32) -> (i32, i32) {
    %c0_i32 = arith.constant 0 : i32
    %c0_i32_0 = arith.constant 0 : i32
    %c0_i32_1 = arith.constant 0 : i32
    return %c0_i32, %c0_i32_0 : i32, i32
  }
  func.func @transform_5(%arg0: i32) -> (i32, i32) {
    %c0_i32 = arith.constant 0 : i32
    %c0_i32_0 = arith.constant 0 : i32
    %c0_i32_1 = arith.constant 0 : i32
    return %c0_i32, %c0_i32_0 : i32, i32
  }
  func.func @transform_6(%arg0: i32) -> (i32, i32, i32) {
    %c0_i32 = arith.constant 0 : i32
    %c0_i32_0 = arith.constant 0 : i32
    %c0_i32_1 = arith.constant 0 : i32
    return %arg0, %c0_i32, %c0_i32_0 : i32, i32, i32
  }
}

</mosaic_0001>

<llo_original>
// kernel: _forward_impl.1
$region0: #{_forward_impl.1}
  #allocation0 [shape = 'u32[]', space=smem, size = 0x4, offset = 0x4, fixed_abs, tag = 'smem constant byte address 0x4 - core index']
  #allocation1 [shape = 'u32[144,128]{1,0:T(1,128)}', space=vmem, size = 0x12000, scoped, tag = 'internal scratch']
  %s0 = inlined_call_operand.vmem [shape: f32[2,36,256], index: 0, kind: input, shape index: {}]
  %s1 = inlined_call_operand.vmem [shape: f32[32,36], index: 1, kind: input, shape index: {}]
  %s2 = inlined_call_operand.vmem [shape: f32[2,32,1], index: 2, kind: input, shape index: {}]
  %s3 = inlined_call_operand.vmem [shape: f32[4,288], index: 3, kind: input, shape index: {}]
  %s4 = inlined_call_operand.vmem [shape: f32[4,1], index: 4, kind: input, shape index: {}]
  %s5 = inlined_call_operand.vmem [shape: f32[9,256], index: 5, kind: input, shape index: {}]
  %s6 = inlined_call_operand.vmem [shape: f32[2,4,256], index: 6, kind: output, shape index: {}]
  %s7 = sld [smem:[#allocation0]]
  $region57: #{_forward_impl.1} parent=0
    _
  %s9 = ssub.s32 1, %s7
  %s10 = scalar_select 0, %s9, %s7
  loop: start=0, step=1, limit=4
  $region2: #{_forward_impl.1} parent=0 // loop_pre_header
    _
  $region3: #{_forward_impl.1} parent=0 // loop_header
    %s12 = sphi 0, %s16
    %p13 = scmp.ge.s32.totalorder %s12, 4
    %s22 = sphi 0, %s24
    %s25 = sphi 0, %s22
    %s26 = sphi 0, %s25
    %s42 = sphi 0, %s26
    %s46 = sphi 0, %s46
    %s48 = sphi 0, %s46
    %s49 = sphi 0, %s48
    %s63 = sphi 0, %s49
    %s69 = sphi 0, %s71
    %s72 = sphi 0, %s69
    %s73 = sphi 0, %s72
    %s89 = sphi 0, %s73
    %s93 = sphi 0, %s93
    %s95 = sphi 0, %s93
    %s96 = sphi 0, %s95
    %s110 = sphi 0, %s96
    %s114 = sphi 0, %s114
    %s116 = sphi 0, %s114
    %s117 = sphi 0, %s116
    %s131 = sphi 0, %s117
    %s135 = sphi 0, %s135
    %s137 = sphi 0, %s135
    %s138 = sphi 0, %s137
    %s152 = sphi 0, %s138
    %s158 = sphi 0, %s160
    %s161 = sphi 0, %s158
    %s162 = sphi 0, %s161
    %s178 = sphi 0, %s162
  $region4: #{_forward_impl.1} parent=0 // loop_header_branch
    %15 = sbr.rel (%p13) target = $region8
  $region5: #{_forward_impl.1} parent=0 // loop_body
    %s17 = ssub.s32 %s12, 1
    %s18 = ssub.s32 %s12, 2
    %s19 = sadd.s32 %s12, 1
    %s20 = ssub.s32 %s12, %s19
    %p21 = scmp.eq.s32.totalorder %s20, 0
    %s23 = sadd.s32 %s22, 1
    %s24 = scalar_select %p21, %s22, %s23
    %p27 = pneg %p21
    %p28 = scmp.eq.s32.totalorder %s12, 1
    %p29 = por %p27, %p28
    %p30 = scmp.ne.s32.totalorder %s22, %s25
    %p31 = scmp.eq.s32.totalorder %s12, 0
    %p32 = por %p30, %p31
    %p33 = scmp.ne.s32.totalorder %s22, %s25
    %p34 = scmp.eq.s32.totalorder %s17, 1
    %p35 = por %p33, %p34
    %p36 = scmp.ne.s32.totalorder %s25, %s26
    %p37 = scmp.eq.s32.totalorder %s17, 0
    %p38 = por %p36, %p37
    %p39 = scmp.ne.s32.totalorder %s25, %s26
    %p40 = scmp.eq.s32.totalorder %s18, 1
    %p41 = por %p39, %p40
    %p43 = scmp.ne.s32.totalorder %s26, %s42
    %p44 = scmp.eq.s32.totalorder %s18, 0
    %p45 = por %p43, %p44
    %s47 = sadd.s32 %s46, 1
    %p50 = scmp.eq.s32.totalorder %s12, 1
    %p51 = scmp.ne.s32.totalorder %s46, %s48
    %p52 = scmp.eq.s32.totalorder %s12, 0
    %p53 = por %p51, %p52
    %p54 = scmp.ne.s32.totalorder %s46, %s48
    %p55 = scmp.eq.s32.totalorder %s17, 1
    %p56 = por %p54, %p55
    %p57 = scmp.ne.s32.totalorder %s48, %s49
    %p58 = scmp.eq.s32.totalorder %s17, 0
    %p59 = por %p57, %p58
    %p60 = scmp.ne.s32.totalorder %s48, %s49
    %p61 = scmp.eq.s32.totalorder %s18, 1
    %p62 = por %p60, %p61
    %p64 = scmp.ne.s32.totalorder %s49, %s63
    %p65 = scmp.eq.s32.totalorder %s18, 0
    %p66 = por %p64, %p65
    %s67 = ssub.s32 %s12, %s19
    %p68 = scmp.eq.s32.totalorder %s67, 0
    %s70 = sadd.s32 %s69, 1
    %s71 = scalar_select %p68, %s69, %s70
    %p74 = pneg %p68
    %p75 = scmp.eq.s32.totalorder %s12, 1
    %p76 = por %p74, %p75
    %p77 = scmp.ne.s32.totalorder %s69, %s72
    %p78 = scmp.eq.s32.totalorder %s12, 0
    %p79 = por %p77, %p78
    %p80 = scmp.ne.s32.totalorder %s69, %s72
    %p81 = scmp.eq.s32.totalorder %s17, 1
    %p82 = por %p80, %p81
    %p83 = scmp.ne.s32.totalorder %s72, %s73
    %p84 = scmp.eq.s32.totalorder %s17, 0
    %p85 = por %p83, %p84
    %p86 = scmp.ne.s32.totalorder %s72, %s73
    %p87 = scmp.eq.s32.totalorder %s18, 1
    %p88 = por %p86, %p87
    %p90 = scmp.ne.s32.totalorder %s73, %s89
    %p91 = scmp.eq.s32.totalorder %s18, 0
    %p92 = por %p90, %p91
    %s94 = sadd.s32 %s93, 1
    %p97 = scmp.eq.s32.totalorder %s12, 1
    %p98 = scmp.ne.s32.totalorder %s93, %s95
    %p99 = scmp.eq.s32.totalorder %s12, 0
    %p100 = por %p98, %p99
    %p101 = scmp.ne.s32.totalorder %s93, %s95
    %p102 = scmp.eq.s32.totalorder %s17, 1
    %p103 = por %p101, %p102
    %p104 = scmp.ne.s32.totalorder %s95, %s96
    %p105 = scmp.eq.s32.totalorder %s17, 0
    %p106 = por %p104, %p105
    %p107 = scmp.ne.s32.totalorder %s95, %s96
    %p108 = scmp.eq.s32.totalorder %s18, 1
    %p109 = por %p107, %p108
    %p111 = scmp.ne.s32.totalorder %s96, %s110
    %p112 = scmp.eq.s32.totalorder %s18, 0
    %p113 = por %p111, %p112
    %s115 = sadd.s32 %s114, 1
    %p118 = scmp.eq.s32.totalorder %s12, 1
    %p119 = scmp.ne.s32.totalorder %s114, %s116
    %p120 = scmp.eq.s32.totalorder %s12, 0
    %p121 = por %p119, %p120
    %p122 = scmp.ne.s32.totalorder %s114, %s116
    %p123 = scmp.eq.s32.totalorder %s17, 1
    %p124 = por %p122, %p123
    %p125 = scmp.ne.s32.totalorder %s116, %s117
    %p126 = scmp.eq.s32.totalorder %s17, 0
    %p127 = por %p125, %p126
    %p128 = scmp.ne.s32.totalorder %s116, %s117
    %p129 = scmp.eq.s32.totalorder %s18, 1
    %p130 = por %p128, %p129
    %p132 = scmp.ne.s32.totalorder %s117, %s131
    %p133 = scmp.eq.s32.totalorder %s18, 0
    %p134 = por %p132, %p133
    %s136 = sadd.s32 %s135, 1
    %p139 = scmp.eq.s32.totalorder %s12, 1
    %p140 = scmp.ne.s32.totalorder %s135, %s137
    %p141 = scmp.eq.s32.totalorder %s12, 0
    %p142 = por %p140, %p141
    %p143 = scmp.ne.s32.totalorder %s135, %s137
    %p144 = scmp.eq.s32.totalorder %s17, 1
    %p145 = por %p143, %p144
    %p146 = scmp.ne.s32.totalorder %s137, %s138
    %p147 = scmp.eq.s32.totalorder %s17, 0
    %p148 = por %p146, %p147
    %p149 = scmp.ne.s32.totalorder %s137, %s138
    %p150 = scmp.eq.s32.totalorder %s18, 1
    %p151 = por %p149, %p150
    %p153 = scmp.ne.s32.totalorder %s138, %s152
    %p154 = scmp.eq.s32.totalorder %s18, 0
    %p155 = por %p153, %p154
    %s156 = ssub.s32 %s12, %s19
    %p157 = scmp.eq.s32.totalorder %s156, 0
    %s159 = sadd.s32 %s158, 1
    %s160 = scalar_select %p157, %s158, %s159
    %p163 = pneg %p157
    %p164 = scmp.eq.s32.totalorder %s12, 1
    %p165 = por %p163, %p164
    %p166 = scmp.ne.s32.totalorder %s158, %s161
    %p167 = scmp.eq.s32.totalorder %s12, 0
    %p168 = por %p166, %p167
    %p169 = scmp.ne.s32.totalorder %s158, %s161
    %p170 = scmp.eq.s32.totalorder %s17, 1
    %p171 = por %p169, %p170
    %p172 = scmp.ne.s32.totalorder %s161, %s162
    %p173 = scmp.eq.s32.totalorder %s17, 0
    %p174 = por %p172, %p173
    %p175 = scmp.ne.s32.totalorder %s161, %s162
    %p176 = scmp.eq.s32.totalorder %s18, 1
    %p177 = por %p175, %p176
    %p179 = scmp.ne.s32.totalorder %s162, %s178
    %p180 = scmp.eq.s32.totalorder %s18, 0
    %p181 = por %p179, %p180
    %p182 = scmp.le.s32.totalorder 1, %s12
    %p183 = scmp.lt.s32.totalorder %s12, 3
    %p184 = pnand %p182, %p183
    %p185 = pneg %p184
    // Predicated region
    $region9: #{_forward_impl.1} parent=5 // pred_check
      _
    $region10: #{_forward_impl.1} parent=5 // pred_check_branch
      %187 = sbr.rel (%p184) target = $region12
    $region11: #{_forward_impl.1} parent=5 // pred_region
      %s188 = ssub.s32 %s12, 1
      // Predicated region
      $region13: #{_forward_impl.1} parent=11 // pred_check
        %p189 = pneg %p59
      $region14: #{_forward_impl.1} parent=11 // pred_check_branch
        %191 = sbr.rel (%p189) target = $region16
      $region15: #{_forward_impl.1} parent=11 // pred_region
        _
      $region16: #{_forward_impl.1} parent=11 // pred_fallthru
        _
      // Predicated region
      $region17: #{_forward_impl.1} parent=11 // pred_check
        %p192 = pneg %p106
      $region18: #{_forward_impl.1} parent=11 // pred_check_branch
        %194 = sbr.rel (%p192) target = $region20
      $region19: #{_forward_impl.1} parent=11 // pred_region
        _
      $region20: #{_forward_impl.1} parent=11 // pred_fallthru
        _
      // Predicated region
      $region21: #{_forward_impl.1} parent=11 // pred_check
        %p195 = pneg %p127
      $region22: #{_forward_impl.1} parent=11 // pred_check_branch
        %197 = sbr.rel (%p195) target = $region24
      $region23: #{_forward_impl.1} parent=11 // pred_region
        _
      $region24: #{_forward_impl.1} parent=11 // pred_fallthru
        _
      // Predicated region
      $region25: #{_forward_impl.1} parent=11 // pred_check
        %p198 = pneg %p148
      $region26: #{_forward_impl.1} parent=11 // pred_check_branch
        %200 = sbr.rel (%p198) target = $region28
      $region27: #{_forward_impl.1} parent=11 // pred_region
        _
      $region28: #{_forward_impl.1} parent=11 // pred_fallthru
        _
    $region12: #{_forward_impl.1} parent=5 // pred_fallthru
      _
    %p201 = scmp.lt.s32.totalorder %s12, 2
    // Predicated region
    $region29: #{_forward_impl.1} parent=5 // pred_check
      %p202 = pneg %p201
    $region30: #{_forward_impl.1} parent=5 // pred_check_branch
      %204 = sbr.rel (%p202) target = $region32
    $region31: #{_forward_impl.1} parent=5 // pred_region
      // Predicated region
      $region33: #{_forward_impl.1} parent=31 // pred_check
        %p205 = pneg %p32
      $region34: #{_forward_impl.1} parent=31 // pred_check_branch
        %207 = sbr.rel (%p205) target = $region36
      $region35: #{_forward_impl.1} parent=31 // pred_region
        %p208 = scmp.lt.s32.totalorder %s12, 1
        %s209 = scalar_select %p208, %s12, 1
        %s210 = smul.addr %s209, 10
        %s211 = smul.addr %s210, 8
        %s212 = scalar_lea.vmem %s0, %s211
      $region36: #{_forward_impl.1} parent=31 // pred_fallthru
        _
      // Predicated region
      $region37: #{_forward_impl.1} parent=31 // pred_check
        %p213 = pneg %p79
      $region38: #{_forward_impl.1} parent=31 // pred_check_branch
        %215 = sbr.rel (%p213) target = $region40
      $region39: #{_forward_impl.1} parent=31 // pred_region
        %p216 = scmp.lt.s32.totalorder %s12, 1
        %s217 = scalar_select %p216, %s12, 1
        %s218 = smul.addr %s217, 4
        %s219 = smul.addr %s218, 8
        %s220 = scalar_lea.vmem %s2, %s219
      $region40: #{_forward_impl.1} parent=31 // pred_fallthru
        _
    $region32: #{_forward_impl.1} parent=5 // pred_fallthru
      _
    %p221 = scmp.le.s32.totalorder 1, %s12
    %p222 = scmp.lt.s32.totalorder %s12, 3
    %p223 = pnand %p221, %p222
    %p224 = pneg %p223
    // Predicated region
    $region41: #{_forward_impl.1} parent=5 // pred_check
      _
    $region42: #{_forward_impl.1} parent=5 // pred_check_branch
      %226 = sbr.rel (%p223) target = $region44
    $region43: #{_forward_impl.1} parent=5 // pred_region
      %s227 = ssub.s32 %s12, 1
      %p228 = scmp.lt.s32.totalorder %s17, 1
      %s229 = scalar_select %p228, %s17, 1
      %s230 = smul.addr %s229, 10
      %s231 = smul.addr %s230, 8
      %s232 = scalar_lea.vmem %s0, %s231
      %p233 = pneg %p38
      %p234 = pneg %p35
      %p235 = pneg %p59
      %p236 = pneg %p56
      %p237 = scmp.lt.s32.totalorder %s17, 1
      %s238 = scalar_select %p237, %s17, 1
      %s239 = smul.addr %s238, 4
      %s240 = smul.addr %s239, 8
      %s241 = scalar_lea.vmem %s2, %s240
      %p242 = pneg %p85
      %p243 = pneg %p82
      %p244 = pneg %p106
      %p245 = pneg %p103
      %p246 = pneg %p127
      %p247 = pneg %p124
      %p248 = pneg %p148
      %p249 = pneg %p145
      %p250 = pneg %p174
      %p251 = pneg %p171
      %p252 = scmp.lt.s32.totalorder %s17, 1
      %s253 = scalar_select %p252, %s17, 1
      %s254 = smul.addr %s253, 2
      %s255 = smul.addr %s254, 4
      %s256 = scalar_lea.vmem %s6, %s255
      %p257 = scmp.lt.s32.totalorder %s17, 1
      %s258 = scalar_select %p257, %s17, 1
      %s259 = smul.addr %s258, 10
      %s260 = smul.addr %s259, 8
      %s261 = scalar_lea.vmem %s0, %s260
      %p262 = scmp.lt.s32.totalorder %s17, 1
      %s263 = scalar_select %p262, %s17, 1
      %s264 = smul.addr %s263, 4
      %s265 = smul.addr %s264, 8
      %s266 = scalar_lea.vmem %s2, %s265
      %p267 = scmp.lt.s32.totalorder %s17, 1
      %s268 = scalar_select %p267, %s17, 1
      %s269 = smul.addr %s268, 2
      %s270 = smul.addr %s269, 4
      %s271 = scalar_lea.vmem %s6, %s270
      %v272 = vld [vmem:[%s1] sm:$0xff]
      %v273 = vld [vmem:[%s1 + $0x8] sm:$0xff]
      %v274 = vld [vmem:[%s1 + $0x10] sm:$0xff]
      %v275 = vld [vmem:[%s1 + $0x18] sm:$0xff]
      %v276 = vld [vmem:[%s261] sm:$0xff]
      %v277 = vld [vmem:[%s261 + $0x8] sm:$0xff]
      %v278 = vld [vmem:[%s261 + $0x10] sm:$0xff]
      %v279 = vld [vmem:[%s261 + $0x18] sm:$0xff]
      %v280 = vld [vmem:[%s261 + $0x20] sm:$0xff]
      %v281 = vld [vmem:[%s261 + $0x28] sm:$0xff]
      %v282 = vld [vmem:[%s261 + $0x30] sm:$0xff]
      %v283 = vld [vmem:[%s261 + $0x38] sm:$0xff]
      %v284 = vld [vmem:[%s261 + $0x40] sm:$0xf]
      %v285 = vld [vmem:[%s261 + $0x48] sm:$0xf]
      %v286 = vld [vmem:[%s266] sm:$0xff]
      %v287 = vld [vmem:[%s266 + $0x8] sm:$0xff]
      %v288 = vld [vmem:[%s266 + $0x10] sm:$0xff]
      %v289 = vld [vmem:[%s266 + $0x18] sm:$0xff]
      %291 = vset.pattern.permute.xlu0 0
      %292 = vperm.xlu0 %291, %v286
      %v293 = vpop.permute.xlu0 %292
      %296 = vset.pattern.permute.xlu0 0
      %297 = vperm.xlu0 %296, %v287
      %v298 = vpop.permute.xlu0 %297
      %301 = vset.pattern.permute.xlu0 0
      %302 = vperm.xlu0 %301, %v288
      %v303 = vpop.permute.xlu0 %302
      %306 = vset.pattern.permute.xlu0 0
      %307 = vperm.xlu0 %306, %v289
      %v308 = vpop.permute.xlu0 %307
      %vm310 = vcmask 293888
      %v312 = vsel %vm310, %v272, 0
      %v315 = vsel %vm310, %v273, 0
      %v318 = vsel %vm310, %v274, 0
      %v321 = vsel %vm310, %v275, 0
      %vm323 = vcmask 1043456
      %v325 = vsel %vm323, %v284, 0
      %v328 = vsel %vm323, %v285, 0
      %330 = vmatprep.subr.mxu0 %v277
      %331 = vmatpush1.msra.mxu0 %v276
      %332 = vmatprep.subr.mxu0 %v279
      %333 = vmatpush1.msra.mxu0 %v278
      %334 = vmatprep.subr.mxu0 %v281
      %335 = vmatpush1.msra.mxu0 %v280
      %336 = vmatprep.subr.mxu0 %v283
      %337 = vmatpush1.msra.mxu0 %v282
      %338 = vmatprep.subr.mxu0 %v328
      %339 = vmatpush1.msra.mxu0 %v325
      %340 = vmatprep.subr.mxu0 0.0
      %341 = vmatpush1.msra.mxu0 0.0
      %342 = vmatprep.subr.mxu0 0.0
      %343 = vmatpush1.msra.mxu0 0.0
      %344 = vmatprep.subr.mxu0 0.0
      %345 = vmatpush1.msra.mxu0 0.0
      %346 = vmatprep.subr.mxu0 0.0
      %347 = vmatpush1.msra.mxu0 0.0
      %348 = vmatprep.subr.mxu0 0.0
      %349 = vmatpush1.msra.mxu0 0.0
      %350 = vmatprep.subr.mxu0 0.0
      %351 = vmatpush1.msra.mxu0 0.0
      %352 = vmatprep.subr.mxu0 0.0
      %353 = vmatpush1.msra.mxu0 0.0
      %354 = vmatprep.subr.mxu0 0.0
      %355 = vmatpush1.msra.mxu0 0.0
      %356 = vmatprep.subr.mxu0 0.0
      %357 = vmatpush1.msra.mxu0 0.0
      %358 = vmatprep.subr.mxu0 0.0
      %359 = vmatpush1.msra.mxu0 0.0
      %360 = vmatprep.subr.mxu0 0.0
      %361 = vmatpush1.msra.mxu0 0.0
      %362 = vmatprep.subr.mxu0 0.0
      %363 = vmatpush1.msra.mxu0 0.0
      %364 = vmatprep.subr.mxu0 0.0
      %365 = vmatpush1.msra.mxu0 0.0
      %366 = vmatprep.subr.mxu0 0.0
      %367 = vmatpush1.msra.mxu0 0.0
      %368 = vmatprep.subr.mxu0 0.0
      %369 = vmatpush1.msra.mxu0 0.0
      %370 = vmatprep.subr.mxu0 0.0
      %371 = vmatpush1.msra.mxu0 0.0
      %372 = vmatprep.subr.mxu0 0.0
      %373 = vmatpush1.msra.mxu0 0.0
      %374 = vmatprep.subr.mxu0 0.0
      %375 = vmatpush1.msra.mxu0 0.0
      %376 = vmatprep.subr.mxu0 0.0
      %377 = vmatpush1.msra.mxu0 0.0
      %378 = vmatprep.subr.mxu0 0.0
      %379 = vmatpush1.msra.mxu0 0.0
      %380 = vmatprep.subr.mxu0 0.0
      %381 = vmatpush1.msra.mxu0 0.0
      %382 = vmatprep.subr.mxu0 0.0
      %383 = vmatpush1.msra.mxu0 0.0
      %384 = vmatprep.subr.mxu0 0.0
      %385 = vmatpush1.msra.mxu0 0.0
      %386 = vmatprep.subr.mxu0 0.0
      %387 = vmatpush1.msra.mxu0 0.0
      %388 = vmatprep.subr.mxu0 0.0
      %389 = vmatpush1.msra.mxu0 0.0
      %390 = vmatprep.subr.mxu0 0.0
      %391 = vmatpush1.msra.mxu0 0.0
      %392 = vmatprep.subr.mxu0 0.0
      %393 = vmatpush1.msra.mxu0 0.0
      %394 = vmatprep.mubr.f32.mxu0 0.0
      %395 = vmatmul.mubr.f32.gmra.mrb[0].mxu0 %v312
      %v396 = vpop.f32.mrb[0].mxu0
      %v397 = vadd.f32 %v293, %v396
      %v398 = vpop.f32.mrb[0].mxu0
      %v399 = vadd.f32 %v293, %v398
      %400 = vmatprep.mubr.f32.mxu0 0.0
      %401 = vmatmul.mubr.f32.gmra.mrb[0].mxu0 %v315
      %v402 = vpop.f32.mrb[0].mxu0
      %v403 = vadd.f32 %v298, %v402
      %v404 = vpop.f32.mrb[0].mxu0
      %v405 = vadd.f32 %v298, %v404
      %406 = vmatprep.mubr.f32.mxu0 0.0
      %407 = vmatmul.mubr.f32.gmra.mrb[0].mxu0 %v318
      %v408 = vpop.f32.mrb[0].mxu0
      %v409 = vadd.f32 %v303, %v408
      %v410 = vpop.f32.mrb[0].mxu0
      %v411 = vadd.f32 %v303, %v410
      %412 = vmatprep.mubr.f32.mxu0 0.0
      %413 = vmatmul.mubr.f32.gmra.mrb[0].mxu0 %v321
      %v414 = vpop.f32.mrb[0].mxu0
      %v415 = vadd.f32 %v308, %v414
      %v416 = vpop.f32.mrb[0].mxu0
      %v417 = vadd.f32 %v308, %v416
      %418 = vdwg.mxu0
      %v419 = vxor.u32 %v397, 2147483648
      %v420 = vxor.u32 %v399, 2147483648
      %v421 = vxor.u32 %v403, 2147483648
      %v422 = vxor.u32 %v405, 2147483648
      %v423 = vxor.u32 %v409, 2147483648
      %v424 = vxor.u32 %v411, 2147483648
      %v425 = vxor.u32 %v415, 2147483648
      %v426 = vxor.u32 %v417, 2147483648
      %v427 = vmul.f32 %v419, 1.442695
      %v428 = vpow.pop %v427
      %v429 = vmul.f32 %v420, 1.442695
      %v430 = vpow.pop %v429
      %v431 = vmul.f32 %v421, 1.442695
      %v432 = vpow.pop %v431
      %v433 = vmul.f32 %v422, 1.442695
      %v434 = vpow.pop %v433
      %v435 = vmul.f32 %v423, 1.442695
      %v436 = vpow.pop %v435
      %v437 = vmul.f32 %v424, 1.442695
      %v438 = vpow.pop %v437
      %v439 = vmul.f32 %v425, 1.442695
      %v440 = vpow.pop %v439
      %v441 = vmul.f32 %v426, 1.442695
      %v442 = vpow.pop %v441
      %v443 = vadd.f32 %v428, 1.0
      %v444 = vadd.f32 %v430, 1.0
      %v445 = vadd.f32 %v432, 1.0
      %v446 = vadd.f32 %v434, 1.0
      %v447 = vadd.f32 %v436, 1.0
      %v448 = vadd.f32 %v438, 1.0
      %v449 = vadd.f32 %v440, 1.0
      %v450 = vadd.f32 %v442, 1.0
      %v451 = vrcp.pop %v443
      %v452 = vmul.f32 1.0, %v451
      %v453 = vrcp.pop %v444
      %v454 = vmul.f32 1.0, %v453
      %v455 = vrcp.pop %v445
      %v456 = vmul.f32 1.0, %v455
      %v457 = vrcp.pop %v446
      %v458 = vmul.f32 1.0, %v457
      %v459 = vrcp.pop %v447
      %v460 = vmul.f32 1.0, %v459
      %v461 = vrcp.pop %v448
      %v462 = vmul.f32 1.0, %v461
      %v463 = vrcp.pop %v449
      %v464 = vmul.f32 1.0, %v463
      %v465 = vrcp.pop %v450
      %v466 = vmul.f32 1.0, %v465
      %v467 = vmul.f32 %v397, %v452
      %v468 = vmul.f32 %v399, %v454
      %v469 = vmul.f32 %v403, %v456
      %v470 = vmul.f32 %v405, %v458
      %v471 = vmul.f32 %v409, %v460
      %v472 = vmul.f32 %v411, %v462
      %v473 = vmul.f32 %v415, %v464
      %v474 = vmul.f32 %v417, %v466
      %v475 = vld [vmem:[%s5] ss:$8 sm:$0x3]
      %v477 = vlaneseq
      %v478 = vshrl.u32 %v477, 7
      %v479 = vsub.s32 0, %v478
      %v480 = vrot.slane %v475, %v479
      %v481 = vlaneseq
      %v482 = vshrl.u32 %v481, 7
      %v483 = vsub.s32 1, %v482
      %v484 = vrot.slane %v475, %v483
      %485 = vrot.lane.b32.xlu0 %v480, 111
      %v486 = vpop.permute.xlu0 %485
      %487 = vrot.lane.b32.xlu0 %v484, 111
      %v488 = vpop.permute.xlu0 %487
      %vm489 = vcmask 908288
      %v490 = vsel %vm489, %v486, %v488
      %v494 = vmul.f32 %v468, %v486
      %v495 = vmul.f32 %v467, %v490
      %v496 = vmul.f32 %v468, %v488
      %v497 = vmul.f32 %v470, %v486
      %v498 = vmul.f32 %v469, %v490
      %v499 = vmul.f32 %v470, %v488
      %v500 = vmul.f32 %v472, %v486
      %v501 = vmul.f32 %v471, %v490
      %v502 = vmul.f32 %v472, %v488
      %v503 = vmul.f32 %v474, %v486
      %v504 = vmul.f32 %v473, %v490
      %v505 = vmul.f32 %v474, %v488
      %s506 = scalar_lea.vmem %s5, 1
      %v507 = vld [vmem:[%s506] ss:$8 sm:$0x3]
      %v509 = vlaneseq
      %v510 = vshrl.u32 %v509, 7
      %v511 = vsub.s32 0, %v510
      %v512 = vrot.slane %v507, %v511
      %v513 = vlaneseq
      %v514 = vshrl.u32 %v513, 7
      %v515 = vsub.s32 1, %v514
      %v516 = vrot.slane %v507, %v515
      %517 = vrot.lane.b32.xlu0 %v512, 112
      %v518 = vpop.permute.xlu0 %517
      %519 = vrot.lane.b32.xlu0 %v516, 112
      %v520 = vpop.permute.xlu0 %519
      %vm521 = vcmask 916480
      %v522 = vsel %vm521, %v518, %v520
      %v526 = vmul.f32 %v468, %v518
      %v527 = vmul.f32 %v467, %v522
      %v528 = vmul.f32 %v468, %v520
      %v529 = vmul.f32 %v470, %v518
      %v530 = vmul.f32 %v469, %v522
      %v531 = vmul.f32 %v470, %v520
      %v532 = vmul.f32 %v472, %v518
      %v533 = vmul.f32 %v471, %v522
      %v534 = vmul.f32 %v472, %v520
      %v535 = vmul.f32 %v474, %v518
      %v536 = vmul.f32 %v473, %v522
      %v537 = vmul.f32 %v474, %v520
      %s538 = scalar_lea.vmem %s5, 2
      %v539 = vld [vmem:[%s538] ss:$8 sm:$0x3]
      %v541 = vlaneseq
      %v542 = vshrl.u32 %v541, 7
      %v543 = vsub.s32 0, %v542
      %v544 = vrot.slane %v539, %v543
      %v545 = vlaneseq
      %v546 = vshrl.u32 %v545, 7
      %v547 = vsub.s32 1, %v546
      %v548 = vrot.slane %v539, %v547
      %549 = vrot.lane.b32.xlu0 %v544, 113
      %v550 = vpop.permute.xlu0 %549
      %551 = vrot.lane.b32.xlu0 %v548, 113
      %v552 = vpop.permute.xlu0 %551
      %vm553 = vcmask 924672
      %v554 = vsel %vm553, %v550, %v552
      %v558 = vmul.f32 %v468, %v550
      %v559 = vmul.f32 %v467, %v554
      %v560 = vmul.f32 %v468, %v552
      %v561 = vmul.f32 %v470, %v550
      %v562 = vmul.f32 %v469, %v554
      %v563 = vmul.f32 %v470, %v552
      %v564 = vmul.f32 %v472, %v550
      %v565 = vmul.f32 %v471, %v554
      %v566 = vmul.f32 %v472, %v552
      %v567 = vmul.f32 %v474, %v550
      %v568 = vmul.f32 %v473, %v554
      %v569 = vmul.f32 %v474, %v552
      %s570 = scalar_lea.vmem %s5, 3
      %v571 = vld [vmem:[%s570] ss:$8 sm:$0x3]
      %v573 = vlaneseq
      %v574 = vshrl.u32 %v573, 7
      %v575 = vsub.s32 0, %v574
      %v576 = vrot.slane %v571, %v575
      %v577 = vlaneseq
      %v578 = vshrl.u32 %v577, 7
      %v579 = vsub.s32 1, %v578
      %v580 = vrot.slane %v571, %v579
      %581 = vrot.lane.b32.xlu0 %v576, 127
      %v582 = vpop.permute.xlu0 %581
      %583 = vrot.lane.b32.xlu0 %v580, 127
      %v584 = vpop.permute.xlu0 %583
      %vm585 = vcmask 1039360
      %v586 = vsel %vm585, %v582, %v584
      %v590 = vmul.f32 %v468, %v582
      %v591 = vmul.f32 %v467, %v586
      %v592 = vmul.f32 %v468, %v584
      %v593 = vmul.f32 %v470, %v582
      %v594 = vmul.f32 %v469, %v586
      %v595 = vmul.f32 %v470, %v584
      %v596 = vmul.f32 %v472, %v582
      %v597 = vmul.f32 %v471, %v586
      %v598 = vmul.f32 %v472, %v584
      %v599 = vmul.f32 %v474, %v582
      %v600 = vmul.f32 %v473, %v586
      %v601 = vmul.f32 %v474, %v584
      %s602 = scalar_lea.vmem %s5, 5
      %v603 = vld [vmem:[%s602] ss:$8 sm:$0x3]
      %v605 = vlaneseq
      %v606 = vshrl.u32 %v605, 7
      %v607 = vsub.s32 0, %v606
      %v608 = vrot.slane %v603, %v607
      %v609 = vlaneseq
      %v610 = vshrl.u32 %v609, 7
      %v611 = vsub.s32 1, %v610
      %v612 = vrot.slane %v603, %v611
      %613 = vrot.lane.b32.xlu0 %v608, 1
      %v614 = vpop.permute.xlu0 %613
      %615 = vrot.lane.b32.xlu0 %v612, 1
      %v616 = vpop.permute.xlu0 %615
      %vm617 = vcmask 7168
      %v618 = vsel %vm617, %v614, %v616
      %v622 = vmul.f32 %v467, %v614
      %v623 = vmul.f32 %v468, %v618
      %v624 = vmul.f32 %v467, %v616
      %v625 = vmul.f32 %v469, %v614
      %v626 = vmul.f32 %v470, %v618
      %v627 = vmul.f32 %v469, %v616
      %v628 = vmul.f32 %v471, %v614
      %v629 = vmul.f32 %v472, %v618
      %v630 = vmul.f32 %v471, %v616
      %v631 = vmul.f32 %v473, %v614
      %v632 = vmul.f32 %v474, %v618
      %v633 = vmul.f32 %v473, %v616
      %s634 = scalar_lea.vmem %s5, 6
      %v635 = vld [vmem:[%s634] ss:$8 sm:$0x3]
      %v637 = vlaneseq
      %v638 = vshrl.u32 %v637, 7
      %v639 = vsub.s32 0, %v638
      %v640 = vrot.slane %v635, %v639
      %v641 = vlaneseq
      %v642 = vshrl.u32 %v641, 7
      %v643 = vsub.s32 1, %v642
      %v644 = vrot.slane %v635, %v643
      %645 = vrot.lane.b32.xlu0 %v640, 15
      %v646 = vpop.permute.xlu0 %645
      %647 = vrot.lane.b32.xlu0 %v644, 15
      %v648 = vpop.permute.xlu0 %647
      %vm649 = vcmask 121856
      %v650 = vsel %vm649, %v646, %v648
      %v654 = vmul.f32 %v467, %v646
      %v655 = vmul.f32 %v468, %v650
      %v656 = vmul.f32 %v467, %v648
      %v657 = vmul.f32 %v469, %v646
      %v658 = vmul.f32 %v470, %v650
      %v659 = vmul.f32 %v469, %v648
      %v660 = vmul.f32 %v471, %v646
      %v661 = vmul.f32 %v472, %v650
      %v662 = vmul.f32 %v471, %v648
      %v663 = vmul.f32 %v473, %v646
      %v664 = vmul.f32 %v474, %v650
      %v665 = vmul.f32 %v473, %v648
      %s666 = scalar_lea.vmem %s5, 7
      %v667 = vld [vmem:[%s666] ss:$8 sm:$0x3]
      %v669 = vlaneseq
      %v670 = vshrl.u32 %v669, 7
      %v671 = vsub.s32 0, %v670
      %v672 = vrot.slane %v667, %v671
      %v673 = vlaneseq
      %v674 = vshrl.u32 %v673, 7
      %v675 = vsub.s32 1, %v674
      %v676 = vrot.slane %v667, %v675
      %677 = vrot.lane.b32.xlu0 %v672, 16
      %v678 = vpop.permute.xlu0 %677
      %679 = vrot.lane.b32.xlu0 %v676, 16
      %v680 = vpop.permute.xlu0 %679
      %vm681 = vcmask 130048
      %v682 = vsel %vm681, %v678, %v680
      %v686 = vmul.f32 %v467, %v678
      %v687 = vmul.f32 %v468, %v682
      %v688 = vmul.f32 %v467, %v680
      %v689 = vmul.f32 %v469, %v678
      %v690 = vmul.f32 %v470, %v682
      %v691 = vmul.f32 %v469, %v680
      %v692 = vmul.f32 %v471, %v678
      %v693 = vmul.f32 %v472, %v682
      %v694 = vmul.f32 %v471, %v680
      %v695 = vmul.f32 %v473, %v678
      %v696 = vmul.f32 %v474, %v682
      %v697 = vmul.f32 %v473, %v680
      %s698 = scalar_lea.vmem %s5, 16
      %v699 = vld [vmem:[%s698] ss:$8 sm:$0x3]
      %v701 = vlaneseq
      %v702 = vshrl.u32 %v701, 7
      %v703 = vsub.s32 0, %v702
      %v704 = vrot.slane %v699, %v703
      %v705 = vlaneseq
      %v706 = vshrl.u32 %v705, 7
      %v707 = vsub.s32 1, %v706
      %v708 = vrot.slane %v699, %v707
      %709 = vrot.lane.b32.xlu0 %v704, 17
      %v710 = vpop.permute.xlu0 %709
      %711 = vrot.lane.b32.xlu0 %v708, 17
      %v712 = vpop.permute.xlu0 %711
      %vm713 = vcmask 138240
      %v714 = vsel %vm713, %v710, %v712
      %v718 = vmul.f32 %v467, %v710
      %v719 = vmul.f32 %v468, %v714
      %v720 = vmul.f32 %v467, %v712
      %v721 = vmul.f32 %v469, %v710
      %v722 = vmul.f32 %v470, %v714
      %v723 = vmul.f32 %v469, %v712
      %v724 = vmul.f32 %v471, %v710
      %v725 = vmul.f32 %v472, %v714
      %v726 = vmul.f32 %v471, %v712
      %v727 = vmul.f32 %v473, %v710
      %v728 = vmul.f32 %v474, %v714
      %v729 = vmul.f32 %v473, %v712
      %742 = vrot.lane.b32.xlu0 %v526, 127
      %v743 = vpop.permute.xlu0 %742
      %744 = vrot.lane.b32.xlu0 %v527, 127
      %v745 = vpop.permute.xlu0 %744
      %746 = vrot.lane.b32.xlu0 %v528, 127
      %v747 = vpop.permute.xlu0 %746
      %748 = vrot.lane.b32.xlu0 %v529, 127
      %v749 = vpop.permute.xlu0 %748
      %750 = vrot.lane.b32.xlu0 %v530, 127
      %v751 = vpop.permute.xlu0 %750
      %752 = vrot.lane.b32.xlu0 %v531, 127
      %v753 = vpop.permute.xlu0 %752
      %754 = vrot.lane.b32.xlu0 %v532, 127
      %v755 = vpop.permute.xlu0 %754
      %756 = vrot.lane.b32.xlu0 %v533, 127
      %v757 = vpop.permute.xlu0 %756
      %758 = vrot.lane.b32.xlu0 %v534, 127
      %v759 = vpop.permute.xlu0 %758
      %760 = vrot.lane.b32.xlu0 %v535, 127
      %v761 = vpop.permute.xlu0 %760
      %762 = vrot.lane.b32.xlu0 %v536, 127
      %v763 = vpop.permute.xlu0 %762
      %764 = vrot.lane.b32.xlu0 %v537, 127
      %v765 = vpop.permute.xlu0 %764
      %v766 = vsel %vm585, %v743, %v745
      %v767 = vsel %vm585, %v745, %v747
      %v768 = vsel %vm585, %v749, %v751
      %v769 = vsel %vm585, %v751, %v753
      %v770 = vsel %vm585, %v755, %v757
      %v771 = vsel %vm585, %v757, %v759
      %v772 = vsel %vm585, %v761, %v763
      %v773 = vsel %vm585, %v763, %v765
      %786 = vrot.lane.b32.xlu0 %v558, 126
      %v787 = vpop.permute.xlu0 %786
      %788 = vrot.lane.b32.xlu0 %v559, 126
      %v789 = vpop.permute.xlu0 %788
      %790 = vrot.lane.b32.xlu0 %v560, 126
      %v791 = vpop.permute.xlu0 %790
      %792 = vrot.lane.b32.xlu0 %v561, 126
      %v793 = vpop.permute.xlu0 %792
      %794 = vrot.lane.b32.xlu0 %v562, 126
      %v795 = vpop.permute.xlu0 %794
      %796 = vrot.lane.b32.xlu0 %v563, 126
      %v797 = vpop.permute.xlu0 %796
      %798 = vrot.lane.b32.xlu0 %v564, 126
      %v799 = vpop.permute.xlu0 %798
      %800 = vrot.lane.b32.xlu0 %v565, 126
      %v801 = vpop.permute.xlu0 %800
      %802 = vrot.lane.b32.xlu0 %v566, 126
      %v803 = vpop.permute.xlu0 %802
      %804 = vrot.lane.b32.xlu0 %v567, 126
      %v805 = vpop.permute.xlu0 %804
      %806 = vrot.lane.b32.xlu0 %v568, 126
      %v807 = vpop.permute.xlu0 %806
      %808 = vrot.lane.b32.xlu0 %v569, 126
      %v809 = vpop.permute.xlu0 %808
      %vm810 = vcmask 1031168
      %v811 = vsel %vm810, %v787, %v789
      %v812 = vsel %vm810, %v789, %v791
      %v813 = vsel %vm810, %v793, %v795
      %v814 = vsel %vm810, %v795, %v797
      %v815 = vsel %vm810, %v799, %v801
      %v816 = vsel %vm810, %v801, %v803
      %v817 = vsel %vm810, %v805, %v807
      %v818 = vsel %vm810, %v807, %v809
      %831 = vrot.lane.b32.xlu0 %v590, 112
      %v832 = vpop.permute.xlu0 %831
      %833 = vrot.lane.b32.xlu0 %v591, 112
      %v834 = vpop.permute.xlu0 %833
      %835 = vrot.lane.b32.xlu0 %v592, 112
      %v836 = vpop.permute.xlu0 %835
      %837 = vrot.lane.b32.xlu0 %v593, 112
      %v838 = vpop.permute.xlu0 %837
      %839 = vrot.lane.b32.xlu0 %v594, 112
      %v840 = vpop.permute.xlu0 %839
      %841 = vrot.lane.b32.xlu0 %v595, 112
      %v842 = vpop.permute.xlu0 %841
      %843 = vrot.lane.b32.xlu0 %v596, 112
      %v844 = vpop.permute.xlu0 %843
      %845 = vrot.lane.b32.xlu0 %v597, 112
      %v846 = vpop.permute.xlu0 %845
      %847 = vrot.lane.b32.xlu0 %v598, 112
      %v848 = vpop.permute.xlu0 %847
      %849 = vrot.lane.b32.xlu0 %v599, 112
      %v850 = vpop.permute.xlu0 %849
      %851 = vrot.lane.b32.xlu0 %v600, 112
      %v852 = vpop.permute.xlu0 %851
      %853 = vrot.lane.b32.xlu0 %v601, 112
      %v854 = vpop.permute.xlu0 %853
      %v855 = vsel %vm521, %v832, %v834
      %v856 = vsel %vm521, %v834, %v836
      %v857 = vsel %vm521, %v838, %v840
      %v858 = vsel %vm521, %v840, %v842
      %v859 = vsel %vm521, %v844, %v846
      %v860 = vsel %vm521, %v846, %v848
      %v861 = vsel %vm521, %v850, %v852
      %v862 = vsel %vm521, %v852, %v854
      %871 = vrot.lane.b32.xlu0 %v467, 111
      %v872 = vpop.permute.xlu0 %871
      %873 = vrot.lane.b32.xlu0 %v468, 111
      %v874 = vpop.permute.xlu0 %873
      %875 = vrot.lane.b32.xlu0 %v469, 111
      %v876 = vpop.permute.xlu0 %875
      %877 = vrot.lane.b32.xlu0 %v470, 111
      %v878 = vpop.permute.xlu0 %877
      %879 = vrot.lane.b32.xlu0 %v471, 111
      %v880 = vpop.permute.xlu0 %879
      %881 = vrot.lane.b32.xlu0 %v472, 111
      %v882 = vpop.permute.xlu0 %881
      %883 = vrot.lane.b32.xlu0 %v473, 111
      %v884 = vpop.permute.xlu0 %883
      %885 = vrot.lane.b32.xlu0 %v474, 111
      %v886 = vpop.permute.xlu0 %885
      %v887 = vsel %vm489, %v872, %v874
      %v888 = vsel %vm489, %v876, %v878
      %v889 = vsel %vm489, %v880, %v882
      %v890 = vsel %vm489, %v884, %v886
      %903 = vrot.lane.b32.xlu0 %v622, 110
      %v904 = vpop.permute.xlu0 %903
      %905 = vrot.lane.b32.xlu0 %v623, 110
      %v906 = vpop.permute.xlu0 %905
      %907 = vrot.lane.b32.xlu0 %v624, 110
      %v908 = vpop.permute.xlu0 %907
      %909 = vrot.lane.b32.xlu0 %v625, 110
      %v910 = vpop.permute.xlu0 %909
      %911 = vrot.lane.b32.xlu0 %v626, 110
      %v912 = vpop.permute.xlu0 %911
      %913 = vrot.lane.b32.xlu0 %v627, 110
      %v914 = vpop.permute.xlu0 %913
      %915 = vrot.lane.b32.xlu0 %v628, 110
      %v916 = vpop.permute.xlu0 %915
      %917 = vrot.lane.b32.xlu0 %v629, 110
      %v918 = vpop.permute.xlu0 %917
      %919 = vrot.lane.b32.xlu0 %v630, 110
      %v920 = vpop.permute.xlu0 %919
      %921 = vrot.lane.b32.xlu0 %v631, 110
      %v922 = vpop.permute.xlu0 %921
      %923 = vrot.lane.b32.xlu0 %v632, 110
      %v924 = vpop.permute.xlu0 %923
      %925 = vrot.lane.b32.xlu0 %v633, 110
      %v926 = vpop.permute.xlu0 %925
      %vm927 = vcmask 900096
      %v928 = vsel %vm927, %v904, %v906
      %v929 = vsel %vm927, %v906, %v908
      %v930 = vsel %vm927, %v910, %v912
      %v931 = vsel %vm927, %v912, %v914
      %v932 = vsel %vm927, %v916, %v918
      %v933 = vsel %vm927, %v918, %v920
      %v934 = vsel %vm927, %v922, %v924
      %v935 = vsel %vm927, %v924, %v926
      %948 = vrot.lane.b32.xlu0 %v654, 96
      %v949 = vpop.permute.xlu0 %948
      %950 = vrot.lane.b32.xlu0 %v655, 96
      %v951 = vpop.permute.xlu0 %950
      %952 = vrot.lane.b32.xlu0 %v656, 96
      %v953 = vpop.permute.xlu0 %952
      %954 = vrot.lane.b32.xlu0 %v657, 96
      %v955 = vpop.permute.xlu0 %954
      %956 = vrot.lane.b32.xlu0 %v658, 96
      %v957 = vpop.permute.xlu0 %956
      %958 = vrot.lane.b32.xlu0 %v659, 96
      %v959 = vpop.permute.xlu0 %958
      %960 = vrot.lane.b32.xlu0 %v660, 96
      %v961 = vpop.permute.xlu0 %960
      %962 = vrot.lane.b32.xlu0 %v661, 96
      %v963 = vpop.permute.xlu0 %962
      %964 = vrot.lane.b32.xlu0 %v662, 96
      %v965 = vpop.permute.xlu0 %964
      %966 = vrot.lane.b32.xlu0 %v663, 96
      %v967 = vpop.permute.xlu0 %966
      %968 = vrot.lane.b32.xlu0 %v664, 96
      %v969 = vpop.permute.xlu0 %968
      %970 = vrot.lane.b32.xlu0 %v665, 96
      %v971 = vpop.permute.xlu0 %970
      %vm972 = vcmask 785408
      %v973 = vsel %vm972, %v949, %v951
      %v974 = vsel %vm972, %v951, %v953
      %v975 = vsel %vm972, %v955, %v957
      %v976 = vsel %vm972, %v957, %v959
      %v977 = vsel %vm972, %v961, %v963
      %v978 = vsel %vm972, %v963, %v965
      %v979 = vsel %vm972, %v967, %v969
      %v980 = vsel %vm972, %v969, %v971
      %993 = vrot.lane.b32.xlu0 %v686, 95
      %v994 = vpop.permute.xlu0 %993
      %995 = vrot.lane.b32.xlu0 %v687, 95
      %v996 = vpop.permute.xlu0 %995
      %997 = vrot.lane.b32.xlu0 %v688, 95
      %v998 = vpop.permute.xlu0 %997
      %999 = vrot.lane.b32.xlu0 %v689, 95
      %v1000 = vpop.permute.xlu0 %999
      %1001 = vrot.lane.b32.xlu0 %v690, 95
      %v1002 = vpop.permute.xlu0 %1001
      %1003 = vrot.lane.b32.xlu0 %v691, 95
      %v1004 = vpop.permute.xlu0 %1003
      %1005 = vrot.lane.b32.xlu0 %v692, 95
      %v1006 = vpop.permute.xlu0 %1005
      %1007 = vrot.lane.b32.xlu0 %v693, 95
      %v1008 = vpop.permute.xlu0 %1007
      %1009 = vrot.lane.b32.xlu0 %v694, 95
      %v1010 = vpop.permute.xlu0 %1009
      %1011 = vrot.lane.b32.xlu0 %v695, 95
      %v1012 = vpop.permute.xlu0 %1011
      %1013 = vrot.lane.b32.xlu0 %v696, 95
      %v1014 = vpop.permute.xlu0 %1013
      %1015 = vrot.lane.b32.xlu0 %v697, 95
      %v1016 = vpop.permute.xlu0 %1015
      %vm1017 = vcmask 777216
      %v1018 = vsel %vm1017, %v994, %v996
      %v1019 = vsel %vm1017, %v996, %v998
      %v1020 = vsel %vm1017, %v1000, %v1002
      %v1021 = vsel %vm1017, %v1002, %v1004
      %v1022 = vsel %vm1017, %v1006, %v1008
      %v1023 = vsel %vm1017, %v1008, %v1010
      %v1024 = vsel %vm1017, %v1012, %v1014
      %v1025 = vsel %vm1017, %v1014, %v1016
      %1038 = vrot.lane.b32.xlu0 %v718, 94
      %v1039 = vpop.permute.xlu0 %1038
      %1040 = vrot.lane.b32.xlu0 %v719, 94
      %v1041 = vpop.permute.xlu0 %1040
      %1042 = vrot.lane.b32.xlu0 %v720, 94
      %v1043 = vpop.permute.xlu0 %1042
      %1044 = vrot.lane.b32.xlu0 %v721, 94
      %v1045 = vpop.permute.xlu0 %1044
      %1046 = vrot.lane.b32.xlu0 %v722, 94
      %v1047 = vpop.permute.xlu0 %1046
      %1048 = vrot.lane.b32.xlu0 %v723, 94
      %v1049 = vpop.permute.xlu0 %1048
      %1050 = vrot.lane.b32.xlu0 %v724, 94
      %v1051 = vpop.permute.xlu0 %1050
      %1052 = vrot.lane.b32.xlu0 %v725, 94
      %v1053 = vpop.permute.xlu0 %1052
      %1054 = vrot.lane.b32.xlu0 %v726, 94
      %v1055 = vpop.permute.xlu0 %1054
      %1056 = vrot.lane.b32.xlu0 %v727, 94
      %v1057 = vpop.permute.xlu0 %1056
      %1058 = vrot.lane.b32.xlu0 %v728, 94
      %v1059 = vpop.permute.xlu0 %1058
      %1060 = vrot.lane.b32.xlu0 %v729, 94
      %v1061 = vpop.permute.xlu0 %1060
      %vm1062 = vcmask 769024
      %v1063 = vsel %vm1062, %v1039, %v1041
      %v1064 = vsel %vm1062, %v1041, %v1043
      %v1065 = vsel %vm1062, %v1045, %v1047
      %v1066 = vsel %vm1062, %v1047, %v1049
      %v1067 = vsel %vm1062, %v1051, %v1053
      %v1068 = vsel %vm1062, %v1053, %v1055
      %v1069 = vsel %vm1062, %v1057, %v1059
      %v1070 = vsel %vm1062, %v1059, %v1061
      %v1071 = vld [vmem:[%s3] sm:$0xff]
      %v1072 = vld [vmem:[%s3 + $0x8] sm:$0xf]
      %v1073 = vld [vmem:[%s4] sm:$0xf]
      %1075 = vset.pattern.permute.xlu0 0
      %1076 = vperm.xlu0 %1075, %v1073
      %v1077 = vpop.permute.xlu0 %1076
      %v1081 = vcombine.high %v1071, %v1071
      %1095 = vrot.lane.b32.xlu0 %v494, 17
      %v1096 = vpop.permute.xlu0 %1095
      %1097 = vrot.lane.b32.xlu0 %v495, 17
      %v1098 = vpop.permute.xlu0 %1097
      %1099 = vrot.lane.b32.xlu0 %v496, 17
      %v1100 = vpop.permute.xlu0 %1099
      %1101 = vrot.lane.b32.xlu0 %v497, 17
      %v1102 = vpop.permute.xlu0 %1101
      %1103 = vrot.lane.b32.xlu0 %v498, 17
      %v1104 = vpop.permute.xlu0 %1103
      %1105 = vrot.lane.b32.xlu0 %v499, 17
      %v1106 = vpop.permute.xlu0 %1105
      %1107 = vrot.lane.b32.xlu0 %v500, 17
      %v1108 = vpop.permute.xlu0 %1107
      %1109 = vrot.lane.b32.xlu0 %v501, 17
      %v1110 = vpop.permute.xlu0 %1109
      %1111 = vrot.lane.b32.xlu0 %v502, 17
      %v1112 = vpop.permute.xlu0 %1111
      %1113 = vrot.lane.b32.xlu0 %v503, 17
      %v1114 = vpop.permute.xlu0 %1113
      %1115 = vrot.lane.b32.xlu0 %v504, 17
      %v1116 = vpop.permute.xlu0 %1115
      %1117 = vrot.lane.b32.xlu0 %v505, 17
      %v1118 = vpop.permute.xlu0 %1117
      %1119 = vrot.lane.b32.xlu0 %v766, 17
      %v1120 = vpop.permute.xlu0 %1119
      %1121 = vrot.lane.b32.xlu0 %v767, 17
      %v1122 = vpop.permute.xlu0 %1121
      %1123 = vrot.lane.b32.xlu0 %v747, 17
      %v1124 = vpop.permute.xlu0 %1123
      %1125 = vrot.lane.b32.xlu0 %v768, 17
      %v1126 = vpop.permute.xlu0 %1125
      %1127 = vrot.lane.b32.xlu0 %v769, 17
      %v1128 = vpop.permute.xlu0 %1127
      %1129 = vrot.lane.b32.xlu0 %v753, 17
      %v1130 = vpop.permute.xlu0 %1129
      %1131 = vrot.lane.b32.xlu0 %v770, 17
      %v1132 = vpop.permute.xlu0 %1131
      %1133 = vrot.lane.b32.xlu0 %v771, 17
      %v1134 = vpop.permute.xlu0 %1133
      %1135 = vrot.lane.b32.xlu0 %v759, 17
      %v1136 = vpop.permute.xlu0 %1135
      %1137 = vrot.lane.b32.xlu0 %v772, 17
      %v1138 = vpop.permute.xlu0 %1137
      %1139 = vrot.lane.b32.xlu0 %v773, 17
      %v1140 = vpop.permute.xlu0 %1139
      %1141 = vrot.lane.b32.xlu0 %v765, 17
      %v1142 = vpop.permute.xlu0 %1141
      %1143 = vrot.lane.b32.xlu0 %v811, 17
      %v1144 = vpop.permute.xlu0 %1143
      %1145 = vrot.lane.b32.xlu0 %v812, 17
      %v1146 = vpop.permute.xlu0 %1145
      %1147 = vrot.lane.b32.xlu0 %v791, 17
      %v1148 = vpop.permute.xlu0 %1147
      %1149 = vrot.lane.b32.xlu0 %v813, 17
      %v1150 = vpop.permute.xlu0 %1149
      %1151 = vrot.lane.b32.xlu0 %v814, 17
      %v1152 = vpop.permute.xlu0 %1151
      %1153 = vrot.lane.b32.xlu0 %v797, 17
      %v1154 = vpop.permute.xlu0 %1153
      %1155 = vrot.lane.b32.xlu0 %v815, 17
      %v1156 = vpop.permute.xlu0 %1155
      %1157 = vrot.lane.b32.xlu0 %v816, 17
      %v1158 = vpop.permute.xlu0 %1157
      %1159 = vrot.lane.b32.xlu0 %v803, 17
      %v1160 = vpop.permute.xlu0 %1159
      %1161 = vrot.lane.b32.xlu0 %v817, 17
      %v1162 = vpop.permute.xlu0 %1161
      %1163 = vrot.lane.b32.xlu0 %v818, 17
      %v1164 = vpop.permute.xlu0 %1163
      %1165 = vrot.lane.b32.xlu0 %v809, 17
      %v1166 = vpop.permute.xlu0 %1165
      %1167 = vrot.lane.b32.xlu0 %v855, 17
      %v1168 = vpop.permute.xlu0 %1167
      %1169 = vrot.lane.b32.xlu0 %v856, 17
      %v1170 = vpop.permute.xlu0 %1169
      %1171 = vrot.lane.b32.xlu0 %v836, 17
      %v1172 = vpop.permute.xlu0 %1171
      %1173 = vrot.lane.b32.xlu0 %v857, 17
      %v1174 = vpop.permute.xlu0 %1173
      %1175 = vrot.lane.b32.xlu0 %v858, 17
      %v1176 = vpop.permute.xlu0 %1175
      %1177 = vrot.lane.b32.xlu0 %v842, 17
      %v1178 = vpop.permute.xlu0 %1177
      %1179 = vrot.lane.b32.xlu0 %v859, 17
      %v1180 = vpop.permute.xlu0 %1179
      %1181 = vrot.lane.b32.xlu0 %v860, 17
      %v1182 = vpop.permute.xlu0 %1181
      %1183 = vrot.lane.b32.xlu0 %v848, 17
      %v1184 = vpop.permute.xlu0 %1183
      %1185 = vrot.lane.b32.xlu0 %v861, 17
      %v1186 = vpop.permute.xlu0 %1185
      %1187 = vrot.lane.b32.xlu0 %v862, 17
      %v1188 = vpop.permute.xlu0 %1187
      %1189 = vrot.lane.b32.xlu0 %v854, 17
      %v1190 = vpop.permute.xlu0 %1189
      %1191 = vrot.lane.b32.xlu0 %v872, 17
      %v1192 = vpop.permute.xlu0 %1191
      %1193 = vrot.lane.b32.xlu0 %v887, 17
      %v1194 = vpop.permute.xlu0 %1193
      %1195 = vrot.lane.b32.xlu0 %v874, 17
      %v1196 = vpop.permute.xlu0 %1195
      %1197 = vrot.lane.b32.xlu0 %v876, 17
      %v1198 = vpop.permute.xlu0 %1197
      %1199 = vrot.lane.b32.xlu0 %v888, 17
      %v1200 = vpop.permute.xlu0 %1199
      %1201 = vrot.lane.b32.xlu0 %v878, 17
      %v1202 = vpop.permute.xlu0 %1201
      %1203 = vrot.lane.b32.xlu0 %v880, 17
      %v1204 = vpop.permute.xlu0 %1203
      %1205 = vrot.lane.b32.xlu0 %v889, 17
      %v1206 = vpop.permute.xlu0 %1205
      %1207 = vrot.lane.b32.xlu0 %v882, 17
      %v1208 = vpop.permute.xlu0 %1207
      %1209 = vrot.lane.b32.xlu0 %v884, 17
      %v1210 = vpop.permute.xlu0 %1209
      %1211 = vrot.lane.b32.xlu0 %v890, 17
      %v1212 = vpop.permute.xlu0 %1211
      %1213 = vrot.lane.b32.xlu0 %v886, 17
      %v1214 = vpop.permute.xlu0 %1213
      %1215 = vrot.lane.b32.xlu0 %v904, 17
      %v1216 = vpop.permute.xlu0 %1215
      %1217 = vrot.lane.b32.xlu0 %v928, 17
      %v1218 = vpop.permute.xlu0 %1217
      %1219 = vrot.lane.b32.xlu0 %v929, 17
      %v1220 = vpop.permute.xlu0 %1219
      %1221 = vrot.lane.b32.xlu0 %v910, 17
      %v1222 = vpop.permute.xlu0 %1221
      %1223 = vrot.lane.b32.xlu0 %v930, 17
      %v1224 = vpop.permute.xlu0 %1223
      %1225 = vrot.lane.b32.xlu0 %v931, 17
      %v1226 = vpop.permute.xlu0 %1225
      %1227 = vrot.lane.b32.xlu0 %v916, 17
      %v1228 = vpop.permute.xlu0 %1227
      %1229 = vrot.lane.b32.xlu0 %v932, 17
      %v1230 = vpop.permute.xlu0 %1229
      %1231 = vrot.lane.b32.xlu0 %v933, 17
      %v1232 = vpop.permute.xlu0 %1231
      %1233 = vrot.lane.b32.xlu0 %v922, 17
      %v1234 = vpop.permute.xlu0 %1233
      %1235 = vrot.lane.b32.xlu0 %v934, 17
      %v1236 = vpop.permute.xlu0 %1235
      %1237 = vrot.lane.b32.xlu0 %v935, 17
      %v1238 = vpop.permute.xlu0 %1237
      %1239 = vrot.lane.b32.xlu0 %v949, 17
      %v1240 = vpop.permute.xlu0 %1239
      %1241 = vrot.lane.b32.xlu0 %v973, 17
      %v1242 = vpop.permute.xlu0 %1241
      %1243 = vrot.lane.b32.xlu0 %v974, 17
      %v1244 = vpop.permute.xlu0 %1243
      %1245 = vrot.lane.b32.xlu0 %v955, 17
      %v1246 = vpop.permute.xlu0 %1245
      %1247 = vrot.lane.b32.xlu0 %v975, 17
      %v1248 = vpop.permute.xlu0 %1247
      %1249 = vrot.lane.b32.xlu0 %v976, 17
      %v1250 = vpop.permute.xlu0 %1249
      %1251 = vrot.lane.b32.xlu0 %v961, 17
      %v1252 = vpop.permute.xlu0 %1251
      %1253 = vrot.lane.b32.xlu0 %v977, 17
      %v1254 = vpop.permute.xlu0 %1253
      %1255 = vrot.lane.b32.xlu0 %v978, 17
      %v1256 = vpop.permute.xlu0 %1255
      %1257 = vrot.lane.b32.xlu0 %v967, 17
      %v1258 = vpop.permute.xlu0 %1257
      %1259 = vrot.lane.b32.xlu0 %v979, 17
      %v1260 = vpop.permute.xlu0 %1259
      %1261 = vrot.lane.b32.xlu0 %v980, 17
      %v1262 = vpop.permute.xlu0 %1261
      %1263 = vrot.lane.b32.xlu0 %v994, 17
      %v1264 = vpop.permute.xlu0 %1263
      %1265 = vrot.lane.b32.xlu0 %v1018, 17
      %v1266 = vpop.permute.xlu0 %1265
      %1267 = vrot.lane.b32.xlu0 %v1019, 17
      %v1268 = vpop.permute.xlu0 %1267
      %1269 = vrot.lane.b32.xlu0 %v1000, 17
      %v1270 = vpop.permute.xlu0 %1269
      %1271 = vrot.lane.b32.xlu0 %v1020, 17
      %v1272 = vpop.permute.xlu0 %1271
      %1273 = vrot.lane.b32.xlu0 %v1021, 17
      %v1274 = vpop.permute.xlu0 %1273
      %1275 = vrot.lane.b32.xlu0 %v1006, 17
      %v1276 = vpop.permute.xlu0 %1275
      %1277 = vrot.lane.b32.xlu0 %v1022, 17
      %v1278 = vpop.permute.xlu0 %1277
      %1279 = vrot.lane.b32.xlu0 %v1023, 17
      %v1280 = vpop.permute.xlu0 %1279
      %1281 = vrot.lane.b32.xlu0 %v1012, 17
      %v1282 = vpop.permute.xlu0 %1281
      %1283 = vrot.lane.b32.xlu0 %v1024, 17
      %v1284 = vpop.permute.xlu0 %1283
      %1285 = vrot.lane.b32.xlu0 %v1025, 17
      %v1286 = vpop.permute.xlu0 %1285
      %1287 = vrot.lane.b32.xlu0 %v1039, 17
      %v1288 = vpop.permute.xlu0 %1287
      %1289 = vrot.lane.b32.xlu0 %v1063, 17
      %v1290 = vpop.permute.xlu0 %1289
      %1291 = vrot.lane.b32.xlu0 %v1064, 17
      %v1292 = vpop.permute.xlu0 %1291
      %1293 = vrot.lane.b32.xlu0 %v1045, 17
      %v1294 = vpop.permute.xlu0 %1293
      %1295 = vrot.lane.b32.xlu0 %v1065, 17
      %v1296 = vpop.permute.xlu0 %1295
      %1297 = vrot.lane.b32.xlu0 %v1066, 17
      %v1298 = vpop.permute.xlu0 %1297
      %1299 = vrot.lane.b32.xlu0 %v1051, 17
      %v1300 = vpop.permute.xlu0 %1299
      %1301 = vrot.lane.b32.xlu0 %v1067, 17
      %v1302 = vpop.permute.xlu0 %1301
      %1303 = vrot.lane.b32.xlu0 %v1068, 17
      %v1304 = vpop.permute.xlu0 %1303
      %1305 = vrot.lane.b32.xlu0 %v1057, 17
      %v1306 = vpop.permute.xlu0 %1305
      %1307 = vrot.lane.b32.xlu0 %v1069, 17
      %v1308 = vpop.permute.xlu0 %1307
      %1309 = vrot.lane.b32.xlu0 %v1070, 17
      %v1310 = vpop.permute.xlu0 %1309
      %v1311 = vsel %vm713, %v1096, %v1098
      %v1312 = vsel %vm713, %v1098, %v1100
      %v1313 = vsel %vm713, %v1102, %v1104
      %v1314 = vsel %vm713, %v1104, %v1106
      %v1315 = vsel %vm713, %v1108, %v1110
      %v1316 = vsel %vm713, %v1110, %v1112
      %v1317 = vsel %vm713, %v1114, %v1116
      %v1318 = vsel %vm713, %v1116, %v1118
      %v1319 = vsel %vm713, %v1120, %v1122
      %v1320 = vsel %vm713, %v1122, %v1124
      %v1321 = vsel %vm713, %v1126, %v1128
      %v1322 = vsel %vm713, %v1128, %v1130
      %v1323 = vsel %vm713, %v1132, %v1134
      %v1324 = vsel %vm713, %v1134, %v1136
      %v1325 = vsel %vm713, %v1138, %v1140
      %v1326 = vsel %vm713, %v1140, %v1142
      %v1327 = vsel %vm713, %v1144, %v1146
      %v1328 = vsel %vm713, %v1146, %v1148
      %v1329 = vsel %vm713, %v1150, %v1152
      %v1330 = vsel %vm713, %v1152, %v1154
      %v1331 = vsel %vm713, %v1156, %v1158
      %v1332 = vsel %vm713, %v1158, %v1160
      %v1333 = vsel %vm713, %v1162, %v1164
      %v1334 = vsel %vm713, %v1164, %v1166
      %v1335 = vsel %vm713, %v1168, %v1170
      %v1336 = vsel %vm713, %v1170, %v1172
      %v1337 = vsel %vm713, %v1174, %v1176
      %v1338 = vsel %vm713, %v1176, %v1178
      %v1339 = vsel %vm713, %v1180, %v1182
      %v1340 = vsel %vm713, %v1182, %v1184
      %v1341 = vsel %vm713, %v1186, %v1188
      %v1342 = vsel %vm713, %v1188, %v1190
      %v1343 = vsel %vm713, %v1192, %v1194
      %v1344 = vsel %vm713, %v1194, %v1196
      %v1345 = vsel %vm713, %v1198, %v1200
      %v1346 = vsel %vm713, %v1200, %v1202
      %v1347 = vsel %vm713, %v1204, %v1206
      %v1348 = vsel %vm713, %v1206, %v1208
      %v1349 = vsel %vm713, %v1210, %v1212
      %v1350 = vsel %vm713, %v1212, %v1214
      %v1351 = vsel %vm713, %v1216, %v1218
      %v1352 = vsel %vm713, %v1218, %v1220
      %v1353 = vsel %vm713, %v1222, %v1224
      %v1354 = vsel %vm713, %v1224, %v1226
      %v1355 = vsel %vm713, %v1228, %v1230
      %v1356 = vsel %vm713, %v1230, %v1232
      %v1357 = vsel %vm713, %v1234, %v1236
      %v1358 = vsel %vm713, %v1236, %v1238
      %v1359 = vsel %vm713, %v1240, %v1242
      %v1360 = vsel %vm713, %v1242, %v1244
      %v1361 = vsel %vm713, %v1246, %v1248
      %v1362 = vsel %vm713, %v1248, %v1250
      %v1363 = vsel %vm713, %v1252, %v1254
      %v1364 = vsel %vm713, %v1254, %v1256
      %v1365 = vsel %vm713, %v1258, %v1260
      %v1366 = vsel %vm713, %v1260, %v1262
      %v1367 = vsel %vm713, %v1264, %v1266
      %v1368 = vsel %vm713, %v1266, %v1268
      %v1369 = vsel %vm713, %v1270, %v1272
      %v1370 = vsel %vm713, %v1272, %v1274
      %v1371 = vsel %vm713, %v1276, %v1278
      %v1372 = vsel %vm713, %v1278, %v1280
      %v1373 = vsel %vm713, %v1282, %v1284
      %v1374 = vsel %vm713, %v1284, %v1286
      %v1375 = vsel %vm713, %v1288, %v1290
      %v1376 = vsel %vm713, %v1290, %v1292
      %v1377 = vsel %vm713, %v1294, %v1296
      %v1378 = vsel %vm713, %v1296, %v1298
      %v1379 = vsel %vm713, %v1300, %v1302
      %v1380 = vsel %vm713, %v1302, %v1304
      %v1381 = vsel %vm713, %v1306, %v1308
      %v1382 = vsel %vm713, %v1308, %v1310
      %vm1455 = vcmask 261120
      %v1456 = vsel %vm1455, %v1072, 0
      %1458 = vmatprep.subr.mxu0 %v1312
      %1459 = vmatpush1.msra.mxu0 %v1311
      %1460 = vmatprep.subr.mxu0 %v1314
      %1461 = vmatpush1.msra.mxu0 %v1313
      %1462 = vmatprep.subr.mxu0 %v1316
      %1463 = vmatpush1.msra.mxu0 %v1315
      %1464 = vmatprep.subr.mxu0 %v1318
      %1465 = vmatpush1.msra.mxu0 %v1317
      %1466 = vmatprep.subr.mxu0 %v1320
      %1467 = vmatpush1.msra.mxu0 %v1319
      %1468 = vmatprep.subr.mxu0 %v1322
      %1469 = vmatpush1.msra.mxu0 %v1321
      %1470 = vmatprep.subr.mxu0 %v1324
      %1471 = vmatpush1.msra.mxu0 %v1323
      %1472 = vmatprep.subr.mxu0 %v1326
      %1473 = vmatpush1.msra.mxu0 %v1325
      %1474 = vmatprep.subr.mxu0 %v1328
      %1475 = vmatpush1.msra.mxu0 %v1327
      %1476 = vmatprep.subr.mxu0 %v1330
      %1477 = vmatpush1.msra.mxu0 %v1329
      %1478 = vmatprep.subr.mxu0 %v1332
      %1479 = vmatpush1.msra.mxu0 %v1331
      %1480 = vmatprep.subr.mxu0 %v1334
      %1481 = vmatpush1.msra.mxu0 %v1333
      %1482 = vmatprep.subr.mxu0 %v1336
      %1483 = vmatpush1.msra.mxu0 %v1335
      %1484 = vmatprep.subr.mxu0 %v1338
      %1485 = vmatpush1.msra.mxu0 %v1337
      %1486 = vmatprep.subr.mxu0 %v1340
      %1487 = vmatpush1.msra.mxu0 %v1339
      %1488 = vmatprep.subr.mxu0 %v1342
      %1489 = vmatpush1.msra.mxu0 %v1341
      %1490 = vmatprep.subr.mxu0 %v1344
      %1491 = vmatpush1.msra.mxu0 %v1343
      %1492 = vmatprep.subr.mxu0 %v1346
      %1493 = vmatpush1.msra.mxu0 %v1345
      %1494 = vmatprep.subr.mxu0 %v1348
      %1495 = vmatpush1.msra.mxu0 %v1347
      %1496 = vmatprep.subr.mxu0 %v1350
      %1497 = vmatpush1.msra.mxu0 %v1349
      %1498 = vmatprep.subr.mxu0 %v1352
      %1499 = vmatpush1.msra.mxu0 %v1351
      %1500 = vmatprep.subr.mxu0 %v1354
      %1501 = vmatpush1.msra.mxu0 %v1353
      %1502 = vmatprep.subr.mxu0 %v1356
      %1503 = vmatpush1.msra.mxu0 %v1355
      %1504 = vmatprep.subr.mxu0 %v1358
      %1505 = vmatpush1.msra.mxu0 %v1357
      %1506 = vmatprep.subr.mxu0 %v1360
      %1507 = vmatpush1.msra.mxu0 %v1359
      %1508 = vmatprep.subr.mxu0 %v1362
      %1509 = vmatpush1.msra.mxu0 %v1361
      %1510 = vmatprep.subr.mxu0 %v1364
      %1511 = vmatpush1.msra.mxu0 %v1363
      %1512 = vmatprep.subr.mxu0 %v1366
      %1513 = vmatpush1.msra.mxu0 %v1365
      %1514 = vmatprep.subr.mxu0 %v1368
      %1515 = vmatpush1.msra.mxu0 %v1367
      %1516 = vmatprep.subr.mxu0 %v1370
      %1517 = vmatpush1.msra.mxu0 %v1369
      %1518 = vmatprep.subr.mxu0 %v1372
      %1519 = vmatpush1.msra.mxu0 %v1371
      %1520 = vmatprep.subr.mxu0 %v1374
      %1521 = vmatpush1.msra.mxu0 %v1373
      %1522 = vmatprep.mubr.f32.mxu0 %v1081
      %1523 = vmatmul.mubr.f32.gmra.mrb[0].mxu0 %v1071
      %v1524 = vpop.f32.mrb[0].mxu0
      %v1525 = vadd.f32 %v1077, %v1524
      %v1526 = vpop.f32.mrb[0].mxu0
      %v1527 = vadd.f32 %v1077, %v1526
      %1528 = vdwg.mxu0
      %1529 = vmatprep.subr.mxu0 %v1376
      %1530 = vmatpush1.msra.mxu0 %v1375
      %1531 = vmatprep.subr.mxu0 %v1378
      %1532 = vmatpush1.msra.mxu0 %v1377
      %1533 = vmatprep.subr.mxu0 %v1380
      %1534 = vmatpush1.msra.mxu0 %v1379
      %1535 = vmatprep.subr.mxu0 %v1382
      %1536 = vmatpush1.msra.mxu0 %v1381
      %1537 = vmatprep.subr.mxu0 0.0
      %1538 = vmatpush1.msra.mxu0 0.0
      %1539 = vmatprep.subr.mxu0 0.0
      %1540 = vmatpush1.msra.mxu0 0.0
      %1541 = vmatprep.subr.mxu0 0.0
      %1542 = vmatpush1.msra.mxu0 0.0
      %1543 = vmatprep.subr.mxu0 0.0
      %1544 = vmatpush1.msra.mxu0 0.0
      %1545 = vmatprep.subr.mxu0 0.0
      %1546 = vmatpush1.msra.mxu0 0.0
      %1547 = vmatprep.subr.mxu0 0.0
      %1548 = vmatpush1.msra.mxu0 0.0
      %1549 = vmatprep.subr.mxu0 0.0
      %1550 = vmatpush1.msra.mxu0 0.0
      %1551 = vmatprep.subr.mxu0 0.0
      %1552 = vmatpush1.msra.mxu0 0.0
      %1553 = vmatprep.subr.mxu0 0.0
      %1554 = vmatpush1.msra.mxu0 0.0
      %1555 = vmatprep.subr.mxu0 0.0
      %1556 = vmatpush1.msra.mxu0 0.0
      %1557 = vmatprep.subr.mxu0 0.0
      %1558 = vmatpush1.msra.mxu0 0.0
      %1559 = vmatprep.subr.mxu0 0.0
      %1560 = vmatpush1.msra.mxu0 0.0
      %1561 = vmatprep.subr.mxu0 0.0
      %1562 = vmatpush1.msra.mxu0 0.0
      %1563 = vmatprep.subr.mxu0 0.0
      %1564 = vmatpush1.msra.mxu0 0.0
      %1565 = vmatprep.subr.mxu0 0.0
      %1566 = vmatpush1.msra.mxu0 0.0
      %1567 = vmatprep.subr.mxu0 0.0
      %1568 = vmatpush1.msra.mxu0 0.0
      %1569 = vmatprep.subr.mxu0 0.0
      %1570 = vmatpush1.msra.mxu0 0.0
      %1571 = vmatprep.subr.mxu0 0.0
      %1572 = vmatpush1.msra.mxu0 0.0
      %1573 = vmatprep.subr.mxu0 0.0
      %1574 = vmatpush1.msra.mxu0 0.0
      %1575 = vmatprep.subr.mxu0 0.0
      %1576 = vmatpush1.msra.mxu0 0.0
      %1577 = vmatprep.subr.mxu0 0.0
      %1578 = vmatpush1.msra.mxu0 0.0
      %1579 = vmatprep.subr.mxu0 0.0
      %1580 = vmatpush1.msra.mxu0 0.0
      %1581 = vmatprep.subr.mxu0 0.0
      %1582 = vmatpush1.msra.mxu0 0.0
      %1583 = vmatprep.subr.mxu0 0.0
      %1584 = vmatpush1.msra.mxu0 0.0
      %1585 = vmatprep.subr.mxu0 0.0
      %1586 = vmatpush1.msra.mxu0 0.0
      %1587 = vmatprep.subr.mxu0 0.0
      %1588 = vmatpush1.msra.mxu0 0.0
      %1589 = vmatprep.subr.mxu0 0.0
      %1590 = vmatpush1.msra.mxu0 0.0
      %1591 = vmatprep.subr.mxu0 0.0
      %1592 = vmatpush1.msra.mxu0 0.0
      %1593 = vmatprep.mubr.f32.mxu0 0.0
      %1594 = vmatmul.mubr.f32.gmra.mrb[0].mxu0 %v1456
      %v1595 = vpop.f32.mrb[0].mxu0
      %v1596 = vadd.f32 %v1525, %v1595
      %v1597 = vpop.f32.mrb[0].mxu0
      %v1598 = vadd.f32 %v1527, %v1597
      %1599 = vdwg.mxu0
      %v1602 = vcombine.low %v1596, %v1598
      %1604 = vst [vmem:[%s271] sm:$0xff] %v1602
      %p1605 = scmp.lt.s32.totalorder %s17, 1
      %s1606 = scalar_select %p1605, %s17, 1
      %s1607 = smul.addr %s1606, 2
      %s1608 = smul.addr %s1607, 4
      %s1609 = scalar_lea.vmem %s6, %s1608
      // Predicated region
      $region45: #{_forward_impl.1} parent=43 // pred_check
        %p1610 = pneg %p171
      $region46: #{_forward_impl.1} parent=43 // pred_check_branch
        %1612 = sbr.rel (%p1610) target = $region48
      $region47: #{_forward_impl.1} parent=43 // pred_region
        _
      $region48: #{_forward_impl.1} parent=43 // pred_fallthru
        _
    $region44: #{_forward_impl.1} parent=5 // pred_fallthru
      _
    %p1613 = scmp.le.s32.totalorder 2, %s12
    // Predicated region
    $region49: #{_forward_impl.1} parent=5 // pred_check
      %p1614 = pneg %p1613
    $region50: #{_forward_impl.1} parent=5 // pred_check_branch
      %1616 = sbr.rel (%p1614) target = $region52
    $region51: #{_forward_impl.1} parent=5 // pred_region
      %s1617 = ssub.s32 %s12, 2
      // Predicated region
      $region53: #{_forward_impl.1} parent=51 // pred_check
        %p1618 = pneg %p177
      $region54: #{_forward_impl.1} parent=51 // pred_check_branch
        %1620 = sbr.rel (%p1618) target = $region56
      $region55: #{_forward_impl.1} parent=51 // pred_region
        %p1621 = scmp.lt.s32.totalorder %s18, 1
        %s1622 = scalar_select %p1621, %s18, 1
        %s1623 = smul.addr %s1622, 2
        %s1624 = smul.addr %s1623, 4
        %s1625 = scalar_lea.vmem %s6, %s1624
      $region56: #{_forward_impl.1} parent=51 // pred_fallthru
        _
    $region52: #{_forward_impl.1} parent=5 // pred_fallthru
      _
  $region6: #{_forward_impl.1} parent=0 // loop_footer
    %s16 = sadd.s32 1, %s12
  $region7: #{_forward_impl.1} parent=0 // loop_footer_branch
    %11 = sbr.rel target = $region3
  $region8: #{_forward_impl.1} parent=0 // loop_exit
    _

</llo_original>
